<compile_context>
chip_gen: v5e
topology: v5e:2x2
jax: 0.10.0
libtpu: 0.0.40
codegen_flags: <defaults>
</compile_context>

<pallas_src>
import functools

import jax
import jax.numpy as jnp
from jax.experimental import pallas as pl
from jax.experimental.pallas import tpu as pltpu

FEAT_C = 1280   # MobileNetV2 feature channels (fc1 input size)
HID = 256       # fc1 output size


def siamese_head_kernel(f1_ref, f2_ref, w1_ref, b1_ref, w2_ref, b2_ref,
                        out_ref, acc_ref, *, inv_s, batch_tile):
    """One (batch-tile, spatial-tile) grid step.

    f1_ref, f2_ref : (bB, tS, 1280)  feature tiles (f32 or bf16)
    w1_ref         : (1280, 256) f32  fc1 weight (transposed vs. torch)
    b1_ref         : (1, 256)    f32  fc1 bias
    w2_ref         : (256, 1)    f32  fc2 weight (column vector)
    b2_ref         : (1, 1)      f32  fc2 bias
    out_ref        : (bB, 1, 1)  f32  sigmoid output (written on last S step)
    acc_ref        : (2*bB, 1280) f32 running spatial sums, streams stacked
    """
    s = pl.program_id(1)

    @pl.when(s == 0)
    def _init():
        acc_ref[...] = jnp.zeros_like(acc_ref)

    # Hot loop: raw spatial sums only (1/S scale applied once at finalize).
    acc_ref[0:batch_tile, :] = acc_ref[0:batch_tile, :] + jnp.sum(
        f1_ref[...].astype(jnp.float32), axis=1)
    acc_ref[batch_tile:2 * batch_tile, :] = (
        acc_ref[batch_tile:2 * batch_tile, :]
        + jnp.sum(f2_ref[...].astype(jnp.float32), axis=1))

    @pl.when(s == pl.num_programs(1) - 1)
    def _finalize():
        # AdaptiveAvgPool2d(1) + flatten(1): mean over the spatial axis.
        pooled = acc_ref[...] * inv_s                          # (2*bB, 1280)
        # fc1 + ReLU, both streams fused into one MXU matmul.
        h = jnp.dot(pooled, w1_ref[...],
                    preferred_element_type=jnp.float32)        # (2*bB, 256)
        h = jnp.maximum(h + b1_ref[...], 0.0)
        # Dropout(p=0.2): identity in eval mode.
        # F.normalize(dim=-1): x / max(||x||_2, eps), eps = 1e-12.
        nrm = jnp.sqrt(jnp.sum(h * h, axis=-1, keepdims=True))
        e = h / jnp.maximum(nrm, 1e-12)
        diff = jnp.abs(e[0:batch_tile, :] - e[batch_tile:2 * batch_tile, :])
        logits = jnp.dot(diff, w2_ref[...],
                         preferred_element_type=jnp.float32) + b2_ref[...]
        out_ref[...] = jax.nn.sigmoid(logits).reshape(out_ref.shape)


def _pick_spatial_tile(S, target):
    """Largest multiple of 8 that divides S and is <= target (else full S)."""
    if S % 8 != 0:
        return S
    t = max(8, min(target, S) - (min(target, S) % 8))
    while S % t != 0:
        t -= 8
    return t


def siamese_head(feat1, feat2, w1, b1, w2, b2, *,
                 batch_tile=1, spatial_tile_target=512):
    """feat1/feat2: (B, S, 1280) channels-last backbone features."""
    B, S, C = feat1.shape
    assert feat2.shape == (B, S, C) and C == FEAT_C
    bB = batch_tile if (B % batch_tile == 0) else B
    tS = _pick_spatial_tile(S, spatial_tile_target)
    grid = (B // bB, S // tS)

    # fc2 weight as a column vector so the kernel uses a plain MXU dot.
    w2_col = jnp.reshape(w2, (HID, 1))

    feat_spec = pl.BlockSpec((bB, tS, FEAT_C), lambda b, s: (b, s, 0))

    def resident(shape):  # weights: same block every step -> stays in VMEM
        return pl.BlockSpec(tuple(shape), lambda b, s, _n=len(shape): (0,) * _n)

    out_spec = pl.BlockSpec((bB, 1, 1), lambda b, s: (b, 0, 0))

    feat_bytes = jnp.dtype(feat1.dtype).itemsize
    vmem_limit = (
        2 * 2 * bB * tS * FEAT_C * feat_bytes          # f1/f2 double buffers
        + 2 * (FEAT_C * HID + 3 * HID + 1) * 4         # resident params
        + 2 * bB * FEAT_C * 4                          # accumulator scratch
        + (16 << 20))                                  # headroom
    vmem_limit = int(min(vmem_limit, 48 << 20))

    kernel = functools.partial(siamese_head_kernel,
                               inv_s=1.0 / S, batch_tile=bB)

    out = pl.pallas_call(
        kernel,
        out_shape=jax.ShapeDtypeStruct((B, 1, 1), jnp.float32),
        grid=grid,
        in_specs=[feat_spec, feat_spec,
                  resident(w1.shape), resident(b1.shape),
                  resident(w2_col.shape), resident(b2.shape)],
        out_specs=out_spec,
        scratch_shapes=[pltpu.VMEM((2 * bB, FEAT_C), jnp.float32)],
        compiler_params=pltpu.CompilerParams(
            dimension_semantics=("parallel", "arbitrary"),
            vmem_limit_bytes=vmem_limit),
    )(feat1, feat2, w1, b1, w2_col, b2)
    return out.reshape(B, 1)


def standin_backbone(x_nchw, proj_w):
    # TODO(synk): the pretrained MobileNetV2 `features` backbone has no clean
    # in-script Pallas equivalent; replaced by a deterministic 1x1 pointwise
    # projection 3 -> 1280 channels emitting channels-last (B, S, 1280)
    # feature maps of the shape/layout the head kernel consumes.
    B, C, H, W = x_nchw.shape
    x = jnp.transpose(x_nchw, (0, 2, 3, 1)).reshape(B, H * W, C)   # (B, S, 3)
    return jnp.einsum("bsc,cd->bsd", x, proj_w)                    # (B, S, 1280)


def _reference(f1, f2, w1, b1, w2, b2):
    def emb(f):
        p = jnp.mean(f.astype(jnp.float32), axis=1)
        h = jnp.maximum(p @ w1 + b1, 0.0)
        n = jnp.sqrt(jnp.sum(h * h, axis=-1, keepdims=True))
        return h / jnp.maximum(n, 1e-12)
    d = jnp.abs(emb(f1) - emb(f2))
    return jax.nn.sigmoid(d @ w2.T + b2)


if __name__ == "__main__":
    key = jax.random.PRNGKey(0)
    k1, k2, k3, k4, k5, k6, k7 = jax.random.split(key, 7)

    B, H, W = 2, 16, 16
    img1 = jax.random.normal(k1, (B, 3, H, W), dtype=jnp.float32)
    img2 = jax.random.normal(k2, (B, 3, H, W), dtype=jnp.float32)

    # Deterministic synthetic parameters (shapes from the module __init__).
    proj_w = jax.random.normal(k3, (3, FEAT_C), dtype=jnp.float32) * 0.1
    w1 = jax.random.normal(k4, (FEAT_C, HID), dtype=jnp.float32) * (FEAT_C ** -0.5)
    b1 = jax.random.normal(k5, (1, HID), dtype=jnp.float32) * 0.01
    w2 = jax.random.normal(k6, (1, HID), dtype=jnp.float32) * (HID ** -0.5)
    b2 = jax.random.normal(k7, (1, 1), dtype=jnp.float32) * 0.01

    f1 = standin_backbone(img1, proj_w)   # (B, 256, 1280) f32 (bf16 also OK)
    f2 = standin_backbone(img2, proj_w)

    # spatial_tile_target=128 -> 2 spatial steps, exercising the streaming
    # accumulate/finalize path; batch_tile=1 -> 2 parallel batch grid points.
    out = siamese_head(f1, f2, w1, b1, w2, b2,
                       batch_tile=1, spatial_tile_target=128)
    out = jax.block_until_ready(out)

    assert out.shape == (B, 1) and out.dtype == jnp.float32
    assert bool(jnp.all(jnp.isfinite(out)))
    ref = _reference(f1, f2, w1, b1, w2, b2)
    assert bool(jnp.allclose(out, ref, rtol=1e-4, atol=1e-5)), (out, ref)
    print("KERNEL_OK")
</pallas_src>

<mosaic_0001>
module attributes {stable_mosaic.version = 11 : i64} {
  func.func @siamese_head_kernel(%arg0: i32, %arg1: i32, %arg2: memref<1x128x1280xf32, #tpu.memory_space<vmem>>, %arg3: memref<1x128x1280xf32, #tpu.memory_space<vmem>>, %arg4: memref<1280x256xf32, #tpu.memory_space<vmem>>, %arg5: memref<1x256xf32, #tpu.memory_space<vmem>>, %arg6: memref<256x1xf32, #tpu.memory_space<vmem>>, %arg7: memref<1x1xf32, #tpu.memory_space<vmem>>, %arg8: memref<1x1x1xf32, #tpu.memory_space<vmem>>, %arg9: memref<2x1280xf32, #tpu.memory_space<vmem>>) attributes {dimension_semantics = [#tpu.dimension_semantics<parallel>, #tpu.dimension_semantics<arbitrary>], iteration_bounds = array<i64: 2, 2>, scalar_prefetch = 0 : i64, scratch_operands = 1 : i64, tpu.core_type = #tpu.core_type<tc>, window_params = [{transform_indices = @transform_0, window_bounds = array<i64: 1, 128, 1280>}, {transform_indices = @transform_1, window_bounds = array<i64: 1, 128, 1280>}, {pipeline_mode = #tpu.pipeline_mode<synchronous>, transform_indices = @transform_2, window_bounds = array<i64: 1280, 256>}, {pipeline_mode = #tpu.pipeline_mode<synchronous>, transform_indices = @transform_3, window_bounds = array<i64: 1, 256>}, {pipeline_mode = #tpu.pipeline_mode<synchronous>, transform_indices = @transform_4, window_bounds = array<i64: 256, 1>}, {pipeline_mode = #tpu.pipeline_mode<synchronous>, transform_indices = @transform_5, window_bounds = array<i64: 1, 1>}, {transform_indices = @transform_6, window_bounds = array<i64: 1, 1, 1>}]} {
    %c0_i32 = arith.constant 0 : i32
    %0 = arith.cmpi eq, %arg1, %c0_i32 : i32
    %1 = arith.extui %0 : i1 to i32
    %c0_i32_0 = arith.constant 0 : i32
    %2 = arith.cmpi ne, %1, %c0_i32_0 : i32
    scf.if %2 {
      %cst_15 = arith.constant 0.000000e+00 : f32
      %16 = vector.broadcast %cst_15 : f32 to vector<2x1280xf32>
      %c0_16 = arith.constant 0 : index
      %c0_17 = arith.constant 0 : index
      %17 = vector.load %arg9[%c0_16, %c0_17] : memref<2x1280xf32, #tpu.memory_space<vmem>>, vector<2x1280xf32>
      tpu.vector_store %arg9[%c0_16, %c0_17], %16 {strides = array<i32>} : memref<2x1280xf32, #tpu.memory_space<vmem>>, vector<2x1280xf32>,
    } else {
    }
    %c0 = arith.constant 0 : index
    %c0_1 = arith.constant 0 : index
    %3 = vector.load %arg9[%c0, %c0_1] : memref<2x1280xf32, #tpu.memory_space<vmem>>, vector<1x1280xf32>
    %c0_2 = arith.constant 0 : index
    %c0_3 = arith.constant 0 : index
    %c0_4 = arith.constant 0 : index
    %4 = vector.load %arg2[%c0_2, %c0_3, %c0_4] : memref<1x128x1280xf32, #tpu.memory_space<vmem>>, vector<1x128x1280xf32>
    %cst = arith.constant dense<0.000000e+00> : vector<1x1280xf32>
    %5 = vector.multi_reduction <add>, %4, %cst [1] : vector<1x128x1280xf32> to vector<1x1280xf32>
    %6 = arith.addf %3, %5 : vector<1x1280xf32>
    %c0_5 = arith.constant 0 : index
    %c0_6 = arith.constant 0 : index
    %7 = vector.load %arg9[%c0_5, %c0_6] : memref<2x1280xf32, #tpu.memory_space<vmem>>, vector<1x1280xf32>
    tpu.vector_store %arg9[%c0_5, %c0_6], %6 {strides = array<i32>} : memref<2x1280xf32, #tpu.memory_space<vmem>>, vector<1x1280xf32>,
    %c1 = arith.constant 1 : index
    %c0_7 = arith.constant 0 : index
    %8 = vector.load %arg9[%c1, %c0_7] : memref<2x1280xf32, #tpu.memory_space<vmem>>, vector<1x1280xf32>
    %c0_8 = arith.constant 0 : index
    %c0_9 = arith.constant 0 : index
    %c0_10 = arith.constant 0 : index
    %9 = vector.load %arg3[%c0_8, %c0_9, %c0_10] : memref<1x128x1280xf32, #tpu.memory_space<vmem>>, vector<1x128x1280xf32>
    %cst_11 = arith.constant dense<0.000000e+00> : vector<1x1280xf32>
    %10 = vector.multi_reduction <add>, %9, %cst_11 [1] : vector<1x128x1280xf32> to vector<1x1280xf32>
    %11 = arith.addf %8, %10 : vector<1x1280xf32>
    %c1_12 = arith.constant 1 : index
    %c0_13 = arith.constant 0 : index
    %12 = vector.load %arg9[%c1_12, %c0_13] : memref<2x1280xf32, #tpu.memory_space<vmem>>, vector<1x1280xf32>
    tpu.vector_store %arg9[%c1_12, %c0_13], %11 {strides = array<i32>} : memref<2x1280xf32, #tpu.memory_space<vmem>>, vector<1x1280xf32>,
    %c1_i32 = arith.constant 1 : i32
    %13 = arith.cmpi eq, %arg1, %c1_i32 : i32
    %14 = arith.extui %13 : i1 to i32
    %c0_i32_14 = arith.constant 0 : i32
    %15 = arith.cmpi ne, %14, %c0_i32_14 : i32
    scf.if %15 {
      %c0_15 = arith.constant 0 : index
      %c0_16 = arith.constant 0 : index
      %16 = vector.load %arg9[%c0_15, %c0_16] : memref<2x1280xf32, #tpu.memory_space<vmem>>, vector<2x1280xf32>
      %cst_17 = arith.constant 3.906250e-03 : f32
      %17 = vector.broadcast %cst_17 : f32 to vector<2x1280xf32>
      %18 = arith.mulf %16, %17 : vector<2x1280xf32>
      %c0_18 = arith.constant 0 : index
      %c0_19 = arith.constant 0 : index
      %19 = vector.load %arg4[%c0_18, %c0_19] : memref<1280x256xf32, #tpu.memory_space<vmem>>, vector<1280x256xf32>
      %cst_20 = arith.constant dense<0.000000e+00> : vector<2x256xf32>
      %20 = tpu.matmul %18, %19, %cst_20 {dimension_numbers = #tpu.dot_dimension_numbers<[1], [0], [0], [1], [0, 0, 1, 1], [], []>} : vector<2x1280xf32>, vector<1280x256xf32>, vector<2x256xf32> -> vector<2x256xf32>
      %c0_21 = arith.constant 0 : index
      %c0_22 = arith.constant 0 : index
      %21 = vector.load %arg5[%c0_21, %c0_22] : memref<1x256xf32, #tpu.memory_space<vmem>>, vector<1x256xf32>
      %22 = vector.broadcast %21 : vector<1x256xf32> to vector<2x256xf32>
      %23 = arith.addf %20, %22 : vector<2x256xf32>
      %cst_23 = arith.constant 0.000000e+00 : f32
      %24 = vector.broadcast %cst_23 : f32 to vector<2x256xf32>
      %25 = arith.maximumf %23, %24 : vector<2x256xf32>
      %26 = arith.mulf %25, %25 : vector<2x256xf32>
      %cst_24 = arith.constant dense<0.000000e+00> : vector<2xf32>
      %27 = vector.multi_reduction <add>, %26, %cst_24 [1] : vector<2x256xf32> to vector<2xf32>
      %28 = vector.shape_cast %27 : vector<2xf32> to vector<2x1xf32>
      %29 = math.sqrt %28 : vector<2x1xf32>
      %cst_25 = arith.constant 9.99999996E-13 : f32
      %30 = vector.broadcast %cst_25 : f32 to vector<2x1xf32>
      %31 = arith.maximumf %29, %30 : vector<2x1xf32>
      %32 = vector.broadcast %31 : vector<2x1xf32> to vector<2x256xf32>
      %33 = arith.divf %25, %32 : vector<2x256xf32>
      %34 = vector.extract_strided_slice %33 {offsets = [0, 0], sizes = [1, 256], strides = [1, 1]} : vector<2x256xf32> to vector<1x256xf32>
      %35 = vector.extract_strided_slice %33 {offsets = [1, 0], sizes = [1, 256], strides = [1, 1]} : vector<2x256xf32> to vector<1x256xf32>
      %36 = arith.subf %34, %35 : vector<1x256xf32>
      %37 = math.absf %36 : vector<1x256xf32>
      %c0_26 = arith.constant 0 : index
      %c0_27 = arith.constant 0 : index
      %38 = vector.load %arg6[%c0_26, %c0_27] : memref<256x1xf32, #tpu.memory_space<vmem>>, vector<256x1xf32>
      %cst_28 = arith.constant dense<0.000000e+00> : vector<1x1xf32>
      %39 = tpu.matmul %37, %38, %cst_28 {dimension_numbers = #tpu.dot_dimension_numbers<[1], [0], [0], [1], [0, 0, 1, 1], [], []>} : vector<1x256xf32>, vector<256x1xf32>, vector<1x1xf32> -> vector<1x1xf32>
      %c0_29 = arith.constant 0 : index
      %c0_30 = arith.constant 0 : index
      %40 = vector.load %arg7[%c0_29, %c0_30] : memref<1x1xf32, #tpu.memory_space<vmem>>, vector<1x1xf32>
      %41 = arith.addf %39, %40 : vector<1x1xf32>
      %42 = arith.negf %41 : vector<1x1xf32>
      %43 = math.exp %42 : vector<1x1xf32>
      %cst_31 = arith.constant 1.000000e+00 : f32
      %44 = vector.broadcast %cst_31 : f32 to vector<1x1xf32>
      %45 = arith.addf %44, %43 : vector<1x1xf32>
      %46 = arith.divf %44, %45 : vector<1x1xf32>
      %47 = vector.shape_cast %46 : vector<1x1xf32> to vector<1x1x1xf32>
      %c0_32 = arith.constant 0 : index
      %c0_33 = arith.constant 0 : index
      %c0_34 = arith.constant 0 : index
      %48 = vector.load %arg8[%c0_32, %c0_33, %c0_34] : memref<1x1x1xf32, #tpu.memory_space<vmem>>, vector<1x1x1xf32>
      tpu.vector_store %arg8[%c0_32, %c0_33, %c0_34], %47 {strides = array<i32>} : memref<1x1x1xf32, #tpu.memory_space<vmem>>, vector<1x1x1xf32>,
    } else {
    }
    return
  }
  func.func @transform_0(%arg0: i32, %arg1: i32) -> (i32, i32, i32) {
    %c0_i32 = arith.constant 0 : i32
    %c0_i32_0 = arith.constant 0 : i32
    return %arg0, %arg1, %c0_i32 : i32, i32, i32
  }
  func.func @transform_1(%arg0: i32, %arg1: i32) -> (i32, i32, i32) {
    %c0_i32 = arith.constant 0 : i32
    %c0_i32_0 = arith.constant 0 : i32
    return %arg0, %arg1, %c0_i32 : i32, i32, i32
  }
  func.func @transform_2(%arg0: i32, %arg1: i32) -> (i32, i32) {
    %c0_i32 = arith.constant 0 : i32
    %c0_i32_0 = arith.constant 0 : i32
    %c0_i32_1 = arith.constant 0 : i32
    return %c0_i32, %c0_i32_0 : i32, i32
  }
  func.func @transform_3(%arg0: i32, %arg1: i32) -> (i32, i32) {
    %c0_i32 = arith.constant 0 : i32
    %c0_i32_0 = arith.constant 0 : i32
    %c0_i32_1 = arith.constant 0 : i32
    return %c0_i32, %c0_i32_0 : i32, i32
  }
  func.func @transform_4(%arg0: i32, %arg1: i32) -> (i32, i32) {
    %c0_i32 = arith.constant 0 : i32
    %c0_i32_0 = arith.constant 0 : i32
    %c0_i32_1 = arith.constant 0 : i32
    return %c0_i32, %c0_i32_0 : i32, i32
  }
  func.func @transform_5(%arg0: i32, %arg1: i32) -> (i32, i32) {
    %c0_i32 = arith.constant 0 : i32
    %c0_i32_0 = arith.constant 0 : i32
    %c0_i32_1 = arith.constant 0 : i32
    return %c0_i32, %c0_i32_0 : i32, i32
  }
  func.func @transform_6(%arg0: i32, %arg1: i32) -> (i32, i32, i32) {
    %c0_i32 = arith.constant 0 : i32
    %c0_i32_0 = arith.constant 0 : i32
    %c0_i32_1 = arith.constant 0 : i32
    return %arg0, %c0_i32, %c0_i32_0 : i32, i32, i32
  }
}

</mosaic_0001>

<llo_original>
// kernel: tpu_custom_call.1
$region0: #{tpu_custom_call.1}
  #allocation0 [shape = 'u32[]', space=smem, size = 0x4, offset = 0x4, fixed_abs, tag = 'smem constant byte address 0x4 - core index']
  #allocation1 [shape = 'u32[72,128]{1,0:T(1,128)}', space=vmem, size = 0x9000, scoped, tag = 'internal scratch']
  #allocation2 [shape = 'f32[2,1280]{1,0:T(2,128)}', space=vmem, size = 0x2800, scoped, tag = 'scratch operand']
  #allocation3 [shape = 'f32[1,1]{1,0:T(1,128)S(1)}', space=vmem, size = 0x200, scoped, tag = 'scoped memory for tpu_custom_call.1']
  %s0 = inlined_call_operand.hbm [shape: f32[2,256,1280], index: 0, kind: input, shape index: {}]
  %s1 = inlined_call_operand.hbm [shape: f32[2,256,1280], index: 1, kind: input, shape index: {}]
  %s2 = inlined_call_operand.hbm [shape: f32[1280,256], index: 2, kind: input, shape index: {}]
  %s3 = inlined_call_operand.hbm [shape: f32[1,256], index: 3, kind: input, shape index: {}]
  %s4 = inlined_call_operand.vmem [shape: f32[256,1], index: 4, kind: input, shape index: {}]
  %s5 = inlined_call_operand.<no memory space> [shape: f32[1,1], index: 5, kind: input, shape index: {}]
  %s6 = inlined_call_operand.vmem [shape: f32[2,1,1], index: 6, kind: output, shape index: {}]
  %s7 = sld [smem:[#allocation0]]
  $region81: #{tpu_custom_call.1} parent=0
    _
  %s9 = ssub.s32 1, %s7
  %s10 = scalar_select 0, %s9, %s7
  %v11 = vstv %s5
  %12 = vst [vmem:[#allocation3] sm:$0x1] %v11
  $region1: #{tpu_custom_call.1} parent=0
    #allocation4 [shape = 'u8[1310720]{0}', space=vmem, size = 0x140000, scoped, tag = 'input window, operand 0']
    #allocation5 [shape = 's32[2]{0}', space=sflag, size = 0x8, scoped, tag = 'scoped memory for tpu_custom_call.1']
    #allocation6 [shape = 'u8[1310720]{0}', space=vmem, size = 0x140000, scoped, tag = 'input window, operand 1']
    #allocation7 [shape = 's32[2]{0}', space=sflag, size = 0x8, scoped, tag = 'scoped memory for tpu_custom_call.1']
    #allocation8 [shape = 'u8[1310720]{0}', space=vmem, size = 0x140000, scoped, tag = 'input window, operand 2, single buffered']
    #allocation9 [shape = 'u8[1024]{0}', space=vmem, size = 0x400, scoped, tag = 'input window, operand 3, single buffered']
    #allocation10 [shape = 's32[1]{0}', space=sflag, size = 0x4, scoped, tag = 'scoped memory for tpu_custom_call.1']
    %13 = vsyncpa [#allocation5], 0
    %s14 = scalar_lea.sflag [#allocation5], 1
    %15 = vsyncpa %s14, 0
    %16 = vsyncpa [#allocation7], 0
    %s17 = scalar_lea.sflag [#allocation7], 1
    %18 = vsyncpa %s17, 0
    %19 = vsyncpa [#allocation10], 0
    loop: start=0, step=1, limit=6
    $region2: #{tpu_custom_call.1} parent=1 // loop_pre_header
      _
    $region3: #{tpu_custom_call.1} parent=1 // loop_header
      %s21 = sphi 0, %s25
      %p22 = scmp.ge.s32.totalorder %s21, 6
      %s28 = sphi 0, %s40
      %s29 = sphi 0, %s36
      %s30 = sphi 0, %s28
      %s31 = sphi 0, %s29
      %s32 = sphi 0, %s30
      %s33 = sphi 0, %s31
      %s45 = sphi 0, %s47
      %s48 = sphi 0, %s45
      %s49 = sphi 0, %s48
      %s65 = sphi 0, %s49
      %s73 = sphi 0, %s75
      %s76 = sphi 0, %s73
      %s77 = sphi 0, %s76
      %s93 = sphi 0, %s77
      %s97 = sphi 0, %s97
      %s99 = sphi 0, %s97
      %s100 = sphi 0, %s99
      %s114 = sphi 0, %s100
      %s118 = sphi 0, %s118
      %s120 = sphi 0, %s118
      %s121 = sphi 0, %s120
      %s135 = sphi 0, %s121
      %s139 = sphi 0, %s139
      %s141 = sphi 0, %s139
      %s142 = sphi 0, %s141
      %s156 = sphi 0, %s142
      %s160 = sphi 0, %s160
      %s162 = sphi 0, %s160
      %s163 = sphi 0, %s162
      %s177 = sphi 0, %s163
      %s183 = sphi 0, %s185
      %s186 = sphi 0, %s183
      %s187 = sphi 0, %s186
      %s203 = sphi 0, %s187
    $region4: #{tpu_custom_call.1} parent=1 // loop_header_branch
      %24 = sbr.rel (%p22) target = $region8
    $region5: #{tpu_custom_call.1} parent=1 // loop_body
      %s26 = ssub.s32 %s21, 1
      %s27 = ssub.s32 %s21, 2
      %s34 = sadd.s32 1, %s29
      %p35 = scmp.ge.s32.totalorder %s34, 2
      %s36 = scalar_select %p35, 0, %s34
      %s37 = sadd.s32 1, %s28
      %s38 = scalar_select %p35, %s37, %s28
      %p39 = scmp.ge.s32.totalorder %s38, 2
      %s40 = scalar_select %p39, 0, %s38
      %s41 = ssub.s32 %s28, %s40
      %s42 = ssub.s32 %s29, %s36
      %s43 = sor.u32 %s41, %s42
      %p44 = scmp.eq.s32.totalorder %s43, 0
      %s46 = sadd.s32 %s45, 1
      %s47 = scalar_select %p44, %s45, %s46
      %p50 = pneg %p44
      %p51 = scmp.eq.s32.totalorder %s21, 3
      %p52 = por %p50, %p51
      %p53 = scmp.ne.s32.totalorder %s45, %s48
      %p54 = scmp.eq.s32.totalorder %s21, 0
      %p55 = por %p53, %p54
      %p56 = scmp.ne.s32.totalorder %s45, %s48
      %p57 = scmp.eq.s32.totalorder %s26, 3
      %p58 = por %p56, %p57
      %p59 = scmp.ne.s32.totalorder %s48, %s49
      %p60 = scmp.eq.s32.totalorder %s26, 0
      %p61 = por %p59, %p60
      %p62 = scmp.ne.s32.totalorder %s48, %s49
      %p63 = scmp.eq.s32.totalorder %s27, 3
      %p64 = por %p62, %p63
      %p66 = scmp.ne.s32.totalorder %s49, %s65
      %p67 = scmp.eq.s32.totalorder %s27, 0
      %p68 = por %p66, %p67
      %s69 = ssub.s32 %s28, %s40
      %s70 = ssub.s32 %s29, %s36
      %s71 = sor.u32 %s69, %s70
      %p72 = scmp.eq.s32.totalorder %s71, 0
      %s74 = sadd.s32 %s73, 1
      %s75 = scalar_select %p72, %s73, %s74
      %p78 = pneg %p72
      %p79 = scmp.eq.s32.totalorder %s21, 3
      %p80 = por %p78, %p79
      %p81 = scmp.ne.s32.totalorder %s73, %s76
      %p82 = scmp.eq.s32.totalorder %s21, 0
      %p83 = por %p81, %p82
      %p84 = scmp.ne.s32.totalorder %s73, %s76
      %p85 = scmp.eq.s32.totalorder %s26, 3
      %p86 = por %p84, %p85
      %p87 = scmp.ne.s32.totalorder %s76, %s77
      %p88 = scmp.eq.s32.totalorder %s26, 0
      %p89 = por %p87, %p88
      %p90 = scmp.ne.s32.totalorder %s76, %s77
      %p91 = scmp.eq.s32.totalorder %s27, 3
      %p92 = por %p90, %p91
      %p94 = scmp.ne.s32.totalorder %s77, %s93
      %p95 = scmp.eq.s32.totalorder %s27, 0
      %p96 = por %p94, %p95
      %s98 = sadd.s32 %s97, 1
      %p101 = scmp.eq.s32.totalorder %s21, 3
      %p102 = scmp.ne.s32.totalorder %s97, %s99
      %p103 = scmp.eq.s32.totalorder %s21, 0
      %p104 = por %p102, %p103
      %p105 = scmp.ne.s32.totalorder %s97, %s99
      %p106 = scmp.eq.s32.totalorder %s26, 3
      %p107 = por %p105, %p106
      %p108 = scmp.ne.s32.totalorder %s99, %s100
      %p109 = scmp.eq.s32.totalorder %s26, 0
      %p110 = por %p108, %p109
      %p111 = scmp.ne.s32.totalorder %s99, %s100
      %p112 = scmp.eq.s32.totalorder %s27, 3
      %p113 = por %p111, %p112
      %p115 = scmp.ne.s32.totalorder %s100, %s114
      %p116 = scmp.eq.s32.totalorder %s27, 0
      %p117 = por %p115, %p116
      %s119 = sadd.s32 %s118, 1
      %p122 = scmp.eq.s32.totalorder %s21, 3
      %p123 = scmp.ne.s32.totalorder %s118, %s120
      %p124 = scmp.eq.s32.totalorder %s21, 0
      %p125 = por %p123, %p124
      %p126 = scmp.ne.s32.totalorder %s118, %s120
      %p127 = scmp.eq.s32.totalorder %s26, 3
      %p128 = por %p126, %p127
      %p129 = scmp.ne.s32.totalorder %s120, %s121
      %p130 = scmp.eq.s32.totalorder %s26, 0
      %p131 = por %p129, %p130
      %p132 = scmp.ne.s32.totalorder %s120, %s121
      %p133 = scmp.eq.s32.totalorder %s27, 3
      %p134 = por %p132, %p133
      %p136 = scmp.ne.s32.totalorder %s121, %s135
      %p137 = scmp.eq.s32.totalorder %s27, 0
      %p138 = por %p136, %p137
      %s140 = sadd.s32 %s139, 1
      %p143 = scmp.eq.s32.totalorder %s21, 3
      %p144 = scmp.ne.s32.totalorder %s139, %s141
      %p145 = scmp.eq.s32.totalorder %s21, 0
      %p146 = por %p144, %p145
      %p147 = scmp.ne.s32.totalorder %s139, %s141
      %p148 = scmp.eq.s32.totalorder %s26, 3
      %p149 = por %p147, %p148
      %p150 = scmp.ne.s32.totalorder %s141, %s142
      %p151 = scmp.eq.s32.totalorder %s26, 0
      %p152 = por %p150, %p151
      %p153 = scmp.ne.s32.totalorder %s141, %s142
      %p154 = scmp.eq.s32.totalorder %s27, 3
      %p155 = por %p153, %p154
      %p157 = scmp.ne.s32.totalorder %s142, %s156
      %p158 = scmp.eq.s32.totalorder %s27, 0
      %p159 = por %p157, %p158
      %s161 = sadd.s32 %s160, 1
      %p164 = scmp.eq.s32.totalorder %s21, 3
      %p165 = scmp.ne.s32.totalorder %s160, %s162
      %p166 = scmp.eq.s32.totalorder %s21, 0
      %p167 = por %p165, %p166
      %p168 = scmp.ne.s32.totalorder %s160, %s162
      %p169 = scmp.eq.s32.totalorder %s26, 3
      %p170 = por %p168, %p169
      %p171 = scmp.ne.s32.totalorder %s162, %s163
      %p172 = scmp.eq.s32.totalorder %s26, 0
      %p173 = por %p171, %p172
      %p174 = scmp.ne.s32.totalorder %s162, %s163
      %p175 = scmp.eq.s32.totalorder %s27, 3
      %p176 = por %p174, %p175
      %p178 = scmp.ne.s32.totalorder %s163, %s177
      %p179 = scmp.eq.s32.totalorder %s27, 0
      %p180 = por %p178, %p179
      %s181 = ssub.s32 %s28, %s40
      %p182 = scmp.eq.s32.totalorder %s181, 0
      %s184 = sadd.s32 %s183, 1
      %s185 = scalar_select %p182, %s183, %s184
      %p188 = pneg %p182
      %p189 = scmp.eq.s32.totalorder %s21, 3
      %p190 = por %p188, %p189
      %p191 = scmp.ne.s32.totalorder %s183, %s186
      %p192 = scmp.eq.s32.totalorder %s21, 0
      %p193 = por %p191, %p192
      %p194 = scmp.ne.s32.totalorder %s183, %s186
      %p195 = scmp.eq.s32.totalorder %s26, 3
      %p196 = por %p194, %p195
      %p197 = scmp.ne.s32.totalorder %s186, %s187
      %p198 = scmp.eq.s32.totalorder %s26, 0
      %p199 = por %p197, %p198
      %p200 = scmp.ne.s32.totalorder %s186, %s187
      %p201 = scmp.eq.s32.totalorder %s27, 3
      %p202 = por %p200, %p201
      %p204 = scmp.ne.s32.totalorder %s187, %s203
      %p205 = scmp.eq.s32.totalorder %s27, 0
      %p206 = por %p204, %p205
      %p207 = scmp.le.s32.totalorder 1, %s21
      %p208 = scmp.lt.s32.totalorder %s21, 5
      %p209 = pnand %p207, %p208
      %p210 = pneg %p209
      // Predicated region
      $region9: #{tpu_custom_call.1} parent=5 // pred_check
        _
      $region10: #{tpu_custom_call.1} parent=5 // pred_check_branch
        %212 = sbr.rel (%p209) target = $region12
      $region11: #{tpu_custom_call.1} parent=5 // pred_region
        %s213 = ssub.s32 %s21, 1
        // Predicated region
        $region13: #{tpu_custom_call.1} parent=11 // pred_check
          %p214 = pneg %p110
        $region14: #{tpu_custom_call.1} parent=11 // pred_check_branch
          %216 = sbr.rel (%p214) target = $region16
        $region15: #{tpu_custom_call.1} parent=11 // pred_region
          %218 = vsyncadd [#allocation7], 0
          %s219 = sshll.u32 %s2, 4
          %s220 = int_to_ptr.hbm [resolvable:$true] %s219
          %s221 = sshll.u32 [#allocation8], 4
          %s222 = int_to_ptr.vmem [resolvable:$true] %s221
          %227 = dma.hbm_to_vmem [thread:$0]  %s220, 40960, %s222, [#allocation7], 256, 256, 16
        $region16: #{tpu_custom_call.1} parent=11 // pred_fallthru
          _
        // Predicated region
        $region17: #{tpu_custom_call.1} parent=11 // pred_check
          %p228 = pneg %p131
        $region18: #{tpu_custom_call.1} parent=11 // pred_check_branch
          %230 = sbr.rel (%p228) target = $region20
        $region19: #{tpu_custom_call.1} parent=11 // pred_region
          %232 = vsyncadd [#allocation10], 0
          %s234 = sshll.u32 %s3, 4
          %s235 = int_to_ptr.hbm [resolvable:$true] %s234
          %s236 = sshll.u32 [#allocation9], 4
          %s237 = int_to_ptr.vmem [resolvable:$true] %s236
          %239 = dma.hbm_to_vmem [thread:$0]  %s235, 32, %s237, [#allocation10]
        $region20: #{tpu_custom_call.1} parent=11 // pred_fallthru
          _
        // Predicated region
        $region21: #{tpu_custom_call.1} parent=11 // pred_check
          %p240 = pneg %p152
        $region22: #{tpu_custom_call.1} parent=11 // pred_check_branch
          %242 = sbr.rel (%p240) target = $region24
        $region23: #{tpu_custom_call.1} parent=11 // pred_region
          _
        $region24: #{tpu_custom_call.1} parent=11 // pred_fallthru
          _
        // Predicated region
        $region25: #{tpu_custom_call.1} parent=11 // pred_check
          %p243 = pneg %p173
        $region26: #{tpu_custom_call.1} parent=11 // pred_check_branch
          %245 = sbr.rel (%p243) target = $region28
        $region27: #{tpu_custom_call.1} parent=11 // pred_region
          _
        $region28: #{tpu_custom_call.1} parent=11 // pred_fallthru
          _
      $region12: #{tpu_custom_call.1} parent=5 // pred_fallthru
        _
      %p246 = scmp.lt.s32.totalorder %s21, 4
      // Predicated region
      $region29: #{tpu_custom_call.1} parent=5 // pred_check
        %p247 = pneg %p246
      $region30: #{tpu_custom_call.1} parent=5 // pred_check_branch
        %249 = sbr.rel (%p247) target = $region32
      $region31: #{tpu_custom_call.1} parent=5 // pred_region
        // Predicated region
        $region33: #{tpu_custom_call.1} parent=31 // pred_check
          %p250 = pneg %p55
        $region34: #{tpu_custom_call.1} parent=31 // pred_check_branch
          %252 = sbr.rel (%p250) target = $region36
        $region35: #{tpu_custom_call.1} parent=31 // pred_region
          %s253 = sand.u32 %s45, 1
          %s254 = scalar_lea.sflag [#allocation5], %s253
          %s255 = sand.u32 %s45, 1
          %s256 = smul.addr %s255, 1280
          %s257 = scalar_lea.vmem [#allocation4], %s256
          %s258 = smul.u32 16, %s29
          %260 = vsyncadd %s254, 0
          %s261 = smul.addr %s258, 10
          %s262 = smul.addr %s28, 320
          %s263 = sadd.s32 %s261, %s262
          %s264 = smul.addr %s263, 8
          %s265 = scalar_lea.hbm %s0, %s264
          %s266 = sshll.u32 %s265, 4
          %s267 = int_to_ptr.hbm [resolvable:$true] %s266
          %s268 = sshll.u32 %s257, 4
          %s269 = int_to_ptr.vmem [resolvable:$true] %s268
          %274 = dma.hbm_to_vmem [thread:$0]  %s267, 20480, %s269, %s254, 1280, 1280, 80
        $region36: #{tpu_custom_call.1} parent=31 // pred_fallthru
          _
        // Predicated region
        $region37: #{tpu_custom_call.1} parent=31 // pred_check
          %p275 = pneg %p83
        $region38: #{tpu_custom_call.1} parent=31 // pred_check_branch
          %277 = sbr.rel (%p275) target = $region40
        $region39: #{tpu_custom_call.1} parent=31 // pred_region
          %s278 = sand.u32 %s21, 1
          %s279 = scalar_lea.sflag [#allocation7], %s278
          %s280 = sand.u32 %s73, 1
          %s281 = smul.addr %s280, 1280
          %s282 = scalar_lea.vmem [#allocation6], %s281
          %s283 = smul.u32 16, %s29
          %285 = vsyncadd %s279, 0
          %s286 = smul.addr %s283, 10
          %s287 = smul.addr %s28, 320
          %s288 = sadd.s32 %s286, %s287
          %s289 = smul.addr %s288, 8
          %s290 = scalar_lea.hbm %s1, %s289
          %s291 = sshll.u32 %s290, 4
          %s292 = int_to_ptr.hbm [resolvable:$true] %s291
          %s293 = sshll.u32 %s282, 4
          %s294 = int_to_ptr.vmem [resolvable:$true] %s293
          %299 = dma.hbm_to_vmem [thread:$0]  %s292, 20480, %s294, %s279, 1280, 1280, 80
        $region40: #{tpu_custom_call.1} parent=31 // pred_fallthru
          _
      $region32: #{tpu_custom_call.1} parent=5 // pred_fallthru
        _
      %p300 = scmp.le.s32.totalorder 1, %s21
      %p301 = scmp.lt.s32.totalorder %s21, 5
      %p302 = pnand %p300, %p301
      %p303 = pneg %p302
      // Predicated region
      $region41: #{tpu_custom_call.1} parent=5 // pred_check
        _
      $region42: #{tpu_custom_call.1} parent=5 // pred_check_branch
        %305 = sbr.rel (%p302) target = $region44
      $region43: #{tpu_custom_call.1} parent=5 // pred_region
        %s306 = ssub.s32 %s21, 1
        %s307 = sand.u32 %s48, 1
        %s308 = scalar_lea.sflag [#allocation5], %s307
        %s309 = sand.u32 %s48, 1
        %s310 = smul.addr %s309, 1280
        %s311 = scalar_lea.vmem [#allocation4], %s310
        // Predicated region
        $region45: #{tpu_custom_call.1} parent=43 // pred_check
          %p312 = pneg %p61
        $region46: #{tpu_custom_call.1} parent=43 // pred_check_branch
          %314 = sbr.rel (%p312) target = $region48
        $region47: #{tpu_custom_call.1} parent=43 // pred_region
          %316 = dma.done %s308, 20480
        $region48: #{tpu_custom_call.1} parent=43 // pred_fallthru
          _
        %s317 = sand.u32 %s26, 1
        %s318 = scalar_lea.sflag [#allocation7], %s317
        %s319 = sand.u32 %s76, 1
        %s320 = smul.addr %s319, 1280
        %s321 = scalar_lea.vmem [#allocation6], %s320
        // Predicated region
        $region49: #{tpu_custom_call.1} parent=43 // pred_check
          %p322 = pneg %p89
        $region50: #{tpu_custom_call.1} parent=43 // pred_check_branch
          %324 = sbr.rel (%p322) target = $region52
        $region51: #{tpu_custom_call.1} parent=43 // pred_region
          %326 = dma.done %s318, 20480
        $region52: #{tpu_custom_call.1} parent=43 // pred_fallthru
          _
        // Predicated region
        $region53: #{tpu_custom_call.1} parent=43 // pred_check
          %p327 = pneg %p110
        $region54: #{tpu_custom_call.1} parent=43 // pred_check_branch
          %329 = sbr.rel (%p327) target = $region56
        $region55: #{tpu_custom_call.1} parent=43 // pred_region
          %331 = dma.done [#allocation7], 40960
        $region56: #{tpu_custom_call.1} parent=43 // pred_fallthru
          _
        // Predicated region
        $region57: #{tpu_custom_call.1} parent=43 // pred_check
          %p332 = pneg %p131
        $region58: #{tpu_custom_call.1} parent=43 // pred_check_branch
          %334 = sbr.rel (%p332) target = $region60
        $region59: #{tpu_custom_call.1} parent=43 // pred_region
          %336 = dma.done [#allocation10], 32
        $region60: #{tpu_custom_call.1} parent=43 // pred_fallthru
          _
        %s337 = sand.u32 %s48, 1
        %s338 = scalar_lea.sflag [#allocation5], %s337
        %s339 = sand.u32 %s48, 1
        %s340 = smul.addr %s339, 1280
        %s341 = scalar_lea.vmem [#allocation4], %s340
        %p342 = pneg %p61
        %p343 = pneg %p58
        %s344 = sand.u32 %s26, 1
        %s345 = scalar_lea.sflag [#allocation7], %s344
        %s346 = sand.u32 %s76, 1
        %s347 = smul.addr %s346, 1280
        %s348 = scalar_lea.vmem [#allocation6], %s347
        %p349 = pneg %p89
        %p350 = pneg %p86
        %p351 = pneg %p110
        %p352 = pneg %p107
        %p353 = pneg %p131
        %p354 = pneg %p128
        %p355 = pneg %p152
        %p356 = pneg %p149
        %p357 = pneg %p173
        %p358 = pneg %p170
        %p359 = pneg %p199
        %p360 = pneg %p196
        %p361 = scmp.lt.s32.totalorder %s30, 1
        %s362 = scalar_select %p361, %s30, 1
        %s363 = scalar_lea.vmem %s6, %s362
        %s364 = smul.u32 16, %s31
        %s365 = smul.u32 16, %s31
        %p366 = scmp.lt.s32.totalorder %s30, 1
        %s367 = scalar_select %p366, %s30, 1
        %s368 = scalar_lea.vmem %s6, %s367
        %p369 = scmp.eq.s32.totalorder %s31, 0
        // Predicated region
        $region61: #{tpu_custom_call.1} parent=43 // pred_check
          %p370 = pneg %p369
        $region62: #{tpu_custom_call.1} parent=43 // pred_check_branch
          %372 = sbr.rel (%p370) target = $region64
        $region63: #{tpu_custom_call.1} parent=43 // pred_region
          %373 = vst [vmem:[#allocation2] sm:$0xff] 0.0
          %374 = vst [vmem:[#allocation2 + $0x8] sm:$0xff] 0.0
          %375 = vst [vmem:[#allocation2 + $0x10] sm:$0xf] 0.0
        $region64: #{tpu_custom_call.1} parent=43 // pred_fallthru
          _
        %v376 = vld [vmem:[#allocation2] ss:$2 sm:$0xff]
        %s377 = scalar_lea.vmem [#allocation2], 16
        %v378 = vld [vmem:[%s377] ss:$2 sm:$0x3]
        %v379 = vld [vmem:[%s311] sm:$0xff]
        %v380 = vld [vmem:[%s311 + $0x8] sm:$0xff]
        %v381 = vld [vmem:[%s311 + $0x10] sm:$0xff]
        %v382 = vld [vmem:[%s311 + $0x18] sm:$0xff]
        %v383 = vld [vmem:[%s311 + $0x20] sm:$0xff]
        %v384 = vld [vmem:[%s311 + $0x28] sm:$0xff]
        %v385 = vld [vmem:[%s311 + $0x30] sm:$0xff]
        %v386 = vld [vmem:[%s311 + $0x38] sm:$0xff]
        %v387 = vld [vmem:[%s311 + $0x40] sm:$0xff]
        %v388 = vld [vmem:[%s311 + $0x48] sm:$0xff]
        %v389 = vld [vmem:[%s311 + $0x50] sm:$0xff]
        %v390 = vld [vmem:[%s311 + $0x58] sm:$0xff]
        %v391 = vld [vmem:[%s311 + $0x60] sm:$0xff]
        %v392 = vld [vmem:[%s311 + $0x68] sm:$0xff]
        %v393 = vld [vmem:[%s311 + $0x70] sm:$0xff]
        %v394 = vld [vmem:[%s311 + $0x78] sm:$0xff]
        %v395 = vld [vmem:[%s311 + $0x80] sm:$0xff]
        %v396 = vld [vmem:[%s311 + $0x88] sm:$0xff]
        %v397 = vld [vmem:[%s311 + $0x90] sm:$0xff]
        %v398 = vld [vmem:[%s311 + $0x98] sm:$0xff]
        %v399 = vld [vmem:[%s311 + $0xa0] sm:$0xff]
        %v400 = vld [vmem:[%s311 + $0xa8] sm:$0xff]
        %v401 = vld [vmem:[%s311 + $0xb0] sm:$0xff]
        %v402 = vld [vmem:[%s311 + $0xb8] sm:$0xff]
        %v403 = vld [vmem:[%s311 + $0xc0] sm:$0xff]
        %v404 = vld [vmem:[%s311 + $0xc8] sm:$0xff]
        %v405 = vld [vmem:[%s311 + $0xd0] sm:$0xff]
        %v406 = vld [vmem:[%s311 + $0xd8] sm:$0xff]
        %v407 = vld [vmem:[%s311 + $0xe0] sm:$0xff]
        %v408 = vld [vmem:[%s311 + $0xe8] sm:$0xff]
        %v409 = vld [vmem:[%s311 + $0xf0] sm:$0xff]
        %v410 = vld [vmem:[%s311 + $0xf8] sm:$0xff]
        %v411 = vld [vmem:[%s311 + $0x100] sm:$0xff]
        %v412 = vld [vmem:[%s311 + $0x108] sm:$0xff]
        %v413 = vld [vmem:[%s311 + $0x110] sm:$0xff]
        %v414 = vld [vmem:[%s311 + $0x118] sm:$0xff]
        %v415 = vld [vmem:[%s311 + $0x120] sm:$0xff]
        %v416 = vld [vmem:[%s311 + $0x128] sm:$0xff]
        %v417 = vld [vmem:[%s311 + $0x130] sm:$0xff]
        %v418 = vld [vmem:[%s311 + $0x138] sm:$0xff]
        %v419 = vld [vmem:[%s311 + $0x140] sm:$0xff]
        %v420 = vld [vmem:[%s311 + $0x148] sm:$0xff]
        %v421 = vld [vmem:[%s311 + $0x150] sm:$0xff]
        %v422 = vld [vmem:[%s311 + $0x158] sm:$0xff]
        %v423 = vld [vmem:[%s311 + $0x160] sm:$0xff]
        %v424 = vld [vmem:[%s311 + $0x168] sm:$0xff]
        %v425 = vld [vmem:[%s311 + $0x170] sm:$0xff]
        %v426 = vld [vmem:[%s311 + $0x178] sm:$0xff]
        %v427 = vld [vmem:[%s311 + $0x180] sm:$0xff]
        %v428 = vld [vmem:[%s311 + $0x188] sm:$0xff]
        %v429 = vld [vmem:[%s311 + $0x190] sm:$0xff]
        %v430 = vld [vmem:[%s311 + $0x198] sm:$0xff]
        %v431 = vld [vmem:[%s311 + $0x1a0] sm:$0xff]
        %v432 = vld [vmem:[%s311 + $0x1a8] sm:$0xff]
        %v433 = vld [vmem:[%s311 + $0x1b0] sm:$0xff]
        %v434 = vld [vmem:[%s311 + $0x1b8] sm:$0xff]
        %v435 = vld [vmem:[%s311 + $0x1c0] sm:$0xff]
        %v436 = vld [vmem:[%s311 + $0x1c8] sm:$0xff]
        %v437 = vld [vmem:[%s311 + $0x1d0] sm:$0xff]
        %v438 = vld [vmem:[%s311 + $0x1d8] sm:$0xff]
        %v439 = vld [vmem:[%s311 + $0x1e0] sm:$0xff]
        %v440 = vld [vmem:[%s311 + $0x1e8] sm:$0xff]
        %v441 = vld [vmem:[%s311 + $0x1f0] sm:$0xff]
        %v442 = vld [vmem:[%s311 + $0x1f8] sm:$0xff]
        %v443 = vld [vmem:[%s311 + $0x200] sm:$0xff]
        %v444 = vld [vmem:[%s311 + $0x208] sm:$0xff]
        %v445 = vld [vmem:[%s311 + $0x210] sm:$0xff]
        %v446 = vld [vmem:[%s311 + $0x218] sm:$0xff]
        %v447 = vld [vmem:[%s311 + $0x220] sm:$0xff]
        %v448 = vld [vmem:[%s311 + $0x228] sm:$0xff]
        %v449 = vld [vmem:[%s311 + $0x230] sm:$0xff]
        %v450 = vld [vmem:[%s311 + $0x238] sm:$0xff]
        %v451 = vld [vmem:[%s311 + $0x240] sm:$0xff]
        %v452 = vld [vmem:[%s311 + $0x248] sm:$0xff]
        %v453 = vld [vmem:[%s311 + $0x250] sm:$0xff]
        %v454 = vld [vmem:[%s311 + $0x258] sm:$0xff]
        %v455 = vld [vmem:[%s311 + $0x260] sm:$0xff]
        %v456 = vld [vmem:[%s311 + $0x268] sm:$0xff]
        %v457 = vld [vmem:[%s311 + $0x270] sm:$0xff]
        %v458 = vld [vmem:[%s311 + $0x278] sm:$0xff]
        %v459 = vld [vmem:[%s311 + $0x280] sm:$0xff]
        %v460 = vld [vmem:[%s311 + $0x288] sm:$0xff]
        %v461 = vld [vmem:[%s311 + $0x290] sm:$0xff]
        %v462 = vld [vmem:[%s311 + $0x298] sm:$0xff]
        %v463 = vld [vmem:[%s311 + $0x2a0] sm:$0xff]
        %v464 = vld [vmem:[%s311 + $0x2a8] sm:$0xff]
        %v465 = vld [vmem:[%s311 + $0x2b0] sm:$0xff]
        %v466 = vld [vmem:[%s311 + $0x2b8] sm:$0xff]
        %v467 = vld [vmem:[%s311 + $0x2c0] sm:$0xff]
        %v468 = vld [vmem:[%s311 + $0x2c8] sm:$0xff]
        %v469 = vld [vmem:[%s311 + $0x2d0] sm:$0xff]
        %v470 = vld [vmem:[%s311 + $0x2d8] sm:$0xff]
        %v471 = vld [vmem:[%s311 + $0x2e0] sm:$0xff]
        %v472 = vld [vmem:[%s311 + $0x2e8] sm:$0xff]
        %v473 = vld [vmem:[%s311 + $0x2f0] sm:$0xff]
        %v474 = vld [vmem:[%s311 + $0x2f8] sm:$0xff]
        %v475 = vld [vmem:[%s311 + $0x300] sm:$0xff]
        %v476 = vld [vmem:[%s311 + $0x308] sm:$0xff]
        %v477 = vld [vmem:[%s311 + $0x310] sm:$0xff]
        %v478 = vld [vmem:[%s311 + $0x318] sm:$0xff]
        %v479 = vld [vmem:[%s311 + $0x320] sm:$0xff]
        %v480 = vld [vmem:[%s311 + $0x328] sm:$0xff]
        %v481 = vld [vmem:[%s311 + $0x330] sm:$0xff]
        %v482 = vld [vmem:[%s311 + $0x338] sm:$0xff]
        %v483 = vld [vmem:[%s311 + $0x340] sm:$0xff]
        %v484 = vld [vmem:[%s311 + $0x348] sm:$0xff]
        %v485 = vld [vmem:[%s311 + $0x350] sm:$0xff]
        %v486 = vld [vmem:[%s311 + $0x358] sm:$0xff]
        %v487 = vld [vmem:[%s311 + $0x360] sm:$0xff]
        %v488 = vld [vmem:[%s311 + $0x368] sm:$0xff]
        %v489 = vld [vmem:[%s311 + $0x370] sm:$0xff]
        %v490 = vld [vmem:[%s311 + $0x378] sm:$0xff]
        %v491 = vld [vmem:[%s311 + $0x380] sm:$0xff]
        %v492 = vld [vmem:[%s311 + $0x388] sm:$0xff]
        %v493 = vld [vmem:[%s311 + $0x390] sm:$0xff]
        %v494 = vld [vmem:[%s311 + $0x398] sm:$0xff]
        %v495 = vld [vmem:[%s311 + $0x3a0] sm:$0xff]
        %v496 = vld [vmem:[%s311 + $0x3a8] sm:$0xff]
        %v497 = vld [vmem:[%s311 + $0x3b0] sm:$0xff]
        %v498 = vld [vmem:[%s311 + $0x3b8] sm:$0xff]
        %v499 = vld [vmem:[%s311 + $0x3c0] sm:$0xff]
        %v500 = vld [vmem:[%s311 + $0x3c8] sm:$0xff]
        %v501 = vld [vmem:[%s311 + $0x3d0] sm:$0xff]
        %v502 = vld [vmem:[%s311 + $0x3d8] sm:$0xff]
        %v503 = vld [vmem:[%s311 + $0x3e0] sm:$0xff]
        %v504 = vld [vmem:[%s311 + $0x3e8] sm:$0xff]
        %v505 = vld [vmem:[%s311 + $0x3f0] sm:$0xff]
        %v506 = vld [vmem:[%s311 + $0x3f8] sm:$0xff]
        %v507 = vld [vmem:[%s311 + $0x400] sm:$0xff]
        %v508 = vld [vmem:[%s311 + $0x408] sm:$0xff]
        %v509 = vld [vmem:[%s311 + $0x410] sm:$0xff]
        %v510 = vld [vmem:[%s311 + $0x418] sm:$0xff]
        %v511 = vld [vmem:[%s311 + $0x420] sm:$0xff]
        %v512 = vld [vmem:[%s311 + $0x428] sm:$0xff]
        %v513 = vld [vmem:[%s311 + $0x430] sm:$0xff]
        %v514 = vld [vmem:[%s311 + $0x438] sm:$0xff]
        %v515 = vld [vmem:[%s311 + $0x440] sm:$0xff]
        %v516 = vld [vmem:[%s311 + $0x448] sm:$0xff]
        %v517 = vld [vmem:[%s311 + $0x450] sm:$0xff]
        %v518 = vld [vmem:[%s311 + $0x458] sm:$0xff]
        %v519 = vld [vmem:[%s311 + $0x460] sm:$0xff]
        %v520 = vld [vmem:[%s311 + $0x468] sm:$0xff]
        %v521 = vld [vmem:[%s311 + $0x470] sm:$0xff]
        %v522 = vld [vmem:[%s311 + $0x478] sm:$0xff]
        %v523 = vld [vmem:[%s311 + $0x480] sm:$0xff]
        %v524 = vld [vmem:[%s311 + $0x488] sm:$0xff]
        %v525 = vld [vmem:[%s311 + $0x490] sm:$0xff]
        %v526 = vld [vmem:[%s311 + $0x498] sm:$0xff]
        %v527 = vld [vmem:[%s311 + $0x4a0] sm:$0xff]
        %v528 = vld [vmem:[%s311 + $0x4a8] sm:$0xff]
        %v529 = vld [vmem:[%s311 + $0x4b0] sm:$0xff]
        %v530 = vld [vmem:[%s311 + $0x4b8] sm:$0xff]
        %v531 = vld [vmem:[%s311 + $0x4c0] sm:$0xff]
        %v532 = vld [vmem:[%s311 + $0x4c8] sm:$0xff]
        %v533 = vld [vmem:[%s311 + $0x4d0] sm:$0xff]
        %v534 = vld [vmem:[%s311 + $0x4d8] sm:$0xff]
        %v535 = vld [vmem:[%s311 + $0x4e0] sm:$0xff]
        %v536 = vld [vmem:[%s311 + $0x4e8] sm:$0xff]
        %v537 = vld [vmem:[%s311 + $0x4f0] sm:$0xff]
        %v538 = vld [vmem:[%s311 + $0x4f8] sm:$0xff]
        %v539 = vadd.f32 %v379, %v389
        %v540 = vadd.f32 %v539, %v399
        %v541 = vadd.f32 %v540, %v409
        %v542 = vadd.f32 %v541, %v419
        %v543 = vadd.f32 %v542, %v429
        %v544 = vadd.f32 %v543, %v439
        %v545 = vadd.f32 %v544, %v449
        %v546 = vadd.f32 %v545, %v459
        %v547 = vadd.f32 %v546, %v469
        %v548 = vadd.f32 %v547, %v479
        %v549 = vadd.f32 %v548, %v489
        %v550 = vadd.f32 %v549, %v499
        %v551 = vadd.f32 %v550, %v509
        %v552 = vadd.f32 %v551, %v519
        %v553 = vadd.f32 %v552, %v529
        %v554 = vrot.slane %v553, 4
        %v555 = vadd.f32 %v553, %v554
        %v556 = vrot.slane %v555, 2
        %v557 = vadd.f32 %v555, %v556
        %v558 = vrot.slane %v557, 1
        %v559 = vadd.f32 %v557, %v558
        %v560 = vadd.f32 %v380, %v390
        %v561 = vadd.f32 %v560, %v400
        %v562 = vadd.f32 %v561, %v410
        %v563 = vadd.f32 %v562, %v420
        %v564 = vadd.f32 %v563, %v430
        %v565 = vadd.f32 %v564, %v440
        %v566 = vadd.f32 %v565, %v450
        %v567 = vadd.f32 %v566, %v460
        %v568 = vadd.f32 %v567, %v470
        %v569 = vadd.f32 %v568, %v480
        %v570 = vadd.f32 %v569, %v490
        %v571 = vadd.f32 %v570, %v500
        %v572 = vadd.f32 %v571, %v510
        %v573 = vadd.f32 %v572, %v520
        %v574 = vadd.f32 %v573, %v530
        %v575 = vrot.slane %v574, 4
        %v576 = vadd.f32 %v574, %v575
        %v577 = vrot.slane %v576, 2
        %v578 = vadd.f32 %v576, %v577
        %v579 = vrot.slane %v578, 1
        %v580 = vadd.f32 %v578, %v579
        %v581 = vadd.f32 %v381, %v391
        %v582 = vadd.f32 %v581, %v401
        %v583 = vadd.f32 %v582, %v411
        %v584 = vadd.f32 %v583, %v421
        %v585 = vadd.f32 %v584, %v431
        %v586 = vadd.f32 %v585, %v441
        %v587 = vadd.f32 %v586, %v451
        %v588 = vadd.f32 %v587, %v461
        %v589 = vadd.f32 %v588, %v471
        %v590 = vadd.f32 %v589, %v481
        %v591 = vadd.f32 %v590, %v491
        %v592 = vadd.f32 %v591, %v501
        %v593 = vadd.f32 %v592, %v511
        %v594 = vadd.f32 %v593, %v521
        %v595 = vadd.f32 %v594, %v531
        %v596 = vrot.slane %v595, 4
        %v597 = vadd.f32 %v595, %v596
        %v598 = vrot.slane %v597, 2
        %v599 = vadd.f32 %v597, %v598
        %v600 = vrot.slane %v599, 1
        %v601 = vadd.f32 %v599, %v600
        %v602 = vadd.f32 %v382, %v392
        %v603 = vadd.f32 %v602, %v402
        %v604 = vadd.f32 %v603, %v412
        %v605 = vadd.f32 %v604, %v422
        %v606 = vadd.f32 %v605, %v432
        %v607 = vadd.f32 %v606, %v442
        %v608 = vadd.f32 %v607, %v452
        %v609 = vadd.f32 %v608, %v462
        %v610 = vadd.f32 %v609, %v472
        %v611 = vadd.f32 %v610, %v482
        %v612 = vadd.f32 %v611, %v492
        %v613 = vadd.f32 %v612, %v502
        %v614 = vadd.f32 %v613, %v512
        %v615 = vadd.f32 %v614, %v522
        %v616 = vadd.f32 %v615, %v532
        %v617 = vrot.slane %v616, 4
        %v618 = vadd.f32 %v616, %v617
        %v619 = vrot.slane %v618, 2
        %v620 = vadd.f32 %v618, %v619
        %v621 = vrot.slane %v620, 1
        %v622 = vadd.f32 %v620, %v621
        %v623 = vadd.f32 %v383, %v393
        %v624 = vadd.f32 %v623, %v403
        %v625 = vadd.f32 %v624, %v413
        %v626 = vadd.f32 %v625, %v423
        %v627 = vadd.f32 %v626, %v433
        %v628 = vadd.f32 %v627, %v443
        %v629 = vadd.f32 %v628, %v453
        %v630 = vadd.f32 %v629, %v463
        %v631 = vadd.f32 %v630, %v473
        %v632 = vadd.f32 %v631, %v483
        %v633 = vadd.f32 %v632, %v493
        %v634 = vadd.f32 %v633, %v503
        %v635 = vadd.f32 %v634, %v513
        %v636 = vadd.f32 %v635, %v523
        %v637 = vadd.f32 %v636, %v533
        %v638 = vrot.slane %v637, 4
        %v639 = vadd.f32 %v637, %v638
        %v640 = vrot.slane %v639, 2
        %v641 = vadd.f32 %v639, %v640
        %v642 = vrot.slane %v641, 1
        %v643 = vadd.f32 %v641, %v642
        %v644 = vadd.f32 %v384, %v394
        %v645 = vadd.f32 %v644, %v404
        %v646 = vadd.f32 %v645, %v414
        %v647 = vadd.f32 %v646, %v424
        %v648 = vadd.f32 %v647, %v434
        %v649 = vadd.f32 %v648, %v444
        %v650 = vadd.f32 %v649, %v454
        %v651 = vadd.f32 %v650, %v464
        %v652 = vadd.f32 %v651, %v474
        %v653 = vadd.f32 %v652, %v484
        %v654 = vadd.f32 %v653, %v494
        %v655 = vadd.f32 %v654, %v504
        %v656 = vadd.f32 %v655, %v514
        %v657 = vadd.f32 %v656, %v524
        %v658 = vadd.f32 %v657, %v534
        %v659 = vrot.slane %v658, 4
        %v660 = vadd.f32 %v658, %v659
        %v661 = vrot.slane %v660, 2
        %v662 = vadd.f32 %v660, %v661
        %v663 = vrot.slane %v662, 1
        %v664 = vadd.f32 %v662, %v663
        %v665 = vadd.f32 %v385, %v395
        %v666 = vadd.f32 %v665, %v405
        %v667 = vadd.f32 %v666, %v415
        %v668 = vadd.f32 %v667, %v425
        %v669 = vadd.f32 %v668, %v435
        %v670 = vadd.f32 %v669, %v445
        %v671 = vadd.f32 %v670, %v455
        %v672 = vadd.f32 %v671, %v465
        %v673 = vadd.f32 %v672, %v475
        %v674 = vadd.f32 %v673, %v485
        %v675 = vadd.f32 %v674, %v495
        %v676 = vadd.f32 %v675, %v505
        %v677 = vadd.f32 %v676, %v515
        %v678 = vadd.f32 %v677, %v525
        %v679 = vadd.f32 %v678, %v535
        %v680 = vrot.slane %v679, 4
        %v681 = vadd.f32 %v679, %v680
        %v682 = vrot.slane %v681, 2
        %v683 = vadd.f32 %v681, %v682
        %v684 = vrot.slane %v683, 1
        %v685 = vadd.f32 %v683, %v684
        %v686 = vadd.f32 %v386, %v396
        %v687 = vadd.f32 %v686, %v406
        %v688 = vadd.f32 %v687, %v416
        %v689 = vadd.f32 %v688, %v426
        %v690 = vadd.f32 %v689, %v436
        %v691 = vadd.f32 %v690, %v446
        %v692 = vadd.f32 %v691, %v456
        %v693 = vadd.f32 %v692, %v466
        %v694 = vadd.f32 %v693, %v476
        %v695 = vadd.f32 %v694, %v486
        %v696 = vadd.f32 %v695, %v496
        %v697 = vadd.f32 %v696, %v506
        %v698 = vadd.f32 %v697, %v516
        %v699 = vadd.f32 %v698, %v526
        %v700 = vadd.f32 %v699, %v536
        %v701 = vrot.slane %v700, 4
        %v702 = vadd.f32 %v700, %v701
        %v703 = vrot.slane %v702, 2
        %v704 = vadd.f32 %v702, %v703
        %v705 = vrot.slane %v704, 1
        %v706 = vadd.f32 %v704, %v705
        %v707 = vadd.f32 %v387, %v397
        %v708 = vadd.f32 %v707, %v407
        %v709 = vadd.f32 %v708, %v417
        %v710 = vadd.f32 %v709, %v427
        %v711 = vadd.f32 %v710, %v437
        %v712 = vadd.f32 %v711, %v447
        %v713 = vadd.f32 %v712, %v457
        %v714 = vadd.f32 %v713, %v467
        %v715 = vadd.f32 %v714, %v477
        %v716 = vadd.f32 %v715, %v487
        %v717 = vadd.f32 %v716, %v497
        %v718 = vadd.f32 %v717, %v507
        %v719 = vadd.f32 %v718, %v517
        %v720 = vadd.f32 %v719, %v527
        %v721 = vadd.f32 %v720, %v537
        %v722 = vrot.slane %v721, 4
        %v723 = vadd.f32 %v721, %v722
        %v724 = vrot.slane %v723, 2
        %v725 = vadd.f32 %v723, %v724
        %v726 = vrot.slane %v725, 1
        %v727 = vadd.f32 %v725, %v726
        %v728 = vadd.f32 %v388, %v398
        %v729 = vadd.f32 %v728, %v408
        %v730 = vadd.f32 %v729, %v418
        %v731 = vadd.f32 %v730, %v428
        %v732 = vadd.f32 %v731, %v438
        %v733 = vadd.f32 %v732, %v448
        %v734 = vadd.f32 %v733, %v458
        %v735 = vadd.f32 %v734, %v468
        %v736 = vadd.f32 %v735, %v478
        %v737 = vadd.f32 %v736, %v488
        %v738 = vadd.f32 %v737, %v498
        %v739 = vadd.f32 %v738, %v508
        %v740 = vadd.f32 %v739, %v518
        %v741 = vadd.f32 %v740, %v528
        %v742 = vadd.f32 %v741, %v538
        %v743 = vrot.slane %v742, 4
        %v744 = vadd.f32 %v742, %v743
        %v745 = vrot.slane %v744, 2
        %v746 = vadd.f32 %v744, %v745
        %v747 = vrot.slane %v746, 1
        %v748 = vadd.f32 %v746, %v747
        %v759 = vrot.slane %v580, 7
        %v760 = vrot.slane %v601, 6
        %v761 = vrot.slane %v622, 5
        %v762 = vrot.slane %v643, 4
        %v763 = vrot.slane %v664, 3
        %v764 = vrot.slane %v685, 2
        %v765 = vrot.slane %v706, 1
        %v766 = vrot.slane %v748, 7
        %vm767 = vcmask 1040384
        %v768 = vsel %vm767, %v559, %v759
        %vm769 = vcmask 1042434
        %v770 = vsel %vm769, %v760, %v761
        %vm771 = vcmask 1041408
        %v772 = vsel %vm771, %v768, %v770
        %vm773 = vcmask 1044484
        %v774 = vsel %vm773, %v762, %v763
        %vm775 = vcmask 1046534
        %v776 = vsel %vm775, %v764, %v765
        %vm777 = vcmask 1045508
        %v778 = vsel %vm777, %v774, %v776
        %vm779 = vcmask 1043456
        %v780 = vsel %vm779, %v772, %v778
        %v781 = vsel %vm767, %v727, %v766
        %v784 = vadd.f32 %v376, %v780
        %v785 = vadd.f32 %v378, %v781
        %786 = vst [vmem:[#allocation2] ss:$2 sm:$0xff] %v784
        %v787 = vlaneseq
        %vm788 = vcmp.ge.s32.totalorder %v787, 0
        %vm789 = vcmp.lt.s32.totalorder %v787, 256
        %vm790 = vmand %vm788, %vm789
        %791 = vst.msk [vmem:[%s377] ss:$2 sm:$0x3] %vm790, %v785
        %s792 = scalar_lea.vmem [#allocation2], 1
        %v793 = vld [vmem:[%s792] ss:$2 sm:$0xff]
        %s794 = scalar_lea.vmem [#allocation2], 17
        %v795 = vld [vmem:[%s794] ss:$2 sm:$0x3]
        %v796 = vld [vmem:[%s321] sm:$0xff]
        %v797 = vld [vmem:[%s321 + $0x8] sm:$0xff]
        %v798 = vld [vmem:[%s321 + $0x10] sm:$0xff]
        %v799 = vld [vmem:[%s321 + $0x18] sm:$0xff]
        %v800 = vld [vmem:[%s321 + $0x20] sm:$0xff]
        %v801 = vld [vmem:[%s321 + $0x28] sm:$0xff]
        %v802 = vld [vmem:[%s321 + $0x30] sm:$0xff]
        %v803 = vld [vmem:[%s321 + $0x38] sm:$0xff]
        %v804 = vld [vmem:[%s321 + $0x40] sm:$0xff]
        %v805 = vld [vmem:[%s321 + $0x48] sm:$0xff]
        %v806 = vld [vmem:[%s321 + $0x50] sm:$0xff]
        %v807 = vld [vmem:[%s321 + $0x58] sm:$0xff]
        %v808 = vld [vmem:[%s321 + $0x60] sm:$0xff]
        %v809 = vld [vmem:[%s321 + $0x68] sm:$0xff]
        %v810 = vld [vmem:[%s321 + $0x70] sm:$0xff]
        %v811 = vld [vmem:[%s321 + $0x78] sm:$0xff]
        %v812 = vld [vmem:[%s321 + $0x80] sm:$0xff]
        %v813 = vld [vmem:[%s321 + $0x88] sm:$0xff]
        %v814 = vld [vmem:[%s321 + $0x90] sm:$0xff]
        %v815 = vld [vmem:[%s321 + $0x98] sm:$0xff]
        %v816 = vld [vmem:[%s321 + $0xa0] sm:$0xff]
        %v817 = vld [vmem:[%s321 + $0xa8] sm:$0xff]
        %v818 = vld [vmem:[%s321 + $0xb0] sm:$0xff]
        %v819 = vld [vmem:[%s321 + $0xb8] sm:$0xff]
        %v820 = vld [vmem:[%s321 + $0xc0] sm:$0xff]
        %v821 = vld [vmem:[%s321 + $0xc8] sm:$0xff]
        %v822 = vld [vmem:[%s321 + $0xd0] sm:$0xff]
        %v823 = vld [vmem:[%s321 + $0xd8] sm:$0xff]
        %v824 = vld [vmem:[%s321 + $0xe0] sm:$0xff]
        %v825 = vld [vmem:[%s321 + $0xe8] sm:$0xff]
        %v826 = vld [vmem:[%s321 + $0xf0] sm:$0xff]
        %v827 = vld [vmem:[%s321 + $0xf8] sm:$0xff]
        %v828 = vld [vmem:[%s321 + $0x100] sm:$0xff]
        %v829 = vld [vmem:[%s321 + $0x108] sm:$0xff]
        %v830 = vld [vmem:[%s321 + $0x110] sm:$0xff]
        %v831 = vld [vmem:[%s321 + $0x118] sm:$0xff]
        %v832 = vld [vmem:[%s321 + $0x120] sm:$0xff]
        %v833 = vld [vmem:[%s321 + $0x128] sm:$0xff]
        %v834 = vld [vmem:[%s321 + $0x130] sm:$0xff]
        %v835 = vld [vmem:[%s321 + $0x138] sm:$0xff]
        %v836 = vld [vmem:[%s321 + $0x140] sm:$0xff]
        %v837 = vld [vmem:[%s321 + $0x148] sm:$0xff]
        %v838 = vld [vmem:[%s321 + $0x150] sm:$0xff]
        %v839 = vld [vmem:[%s321 + $0x158] sm:$0xff]
        %v840 = vld [vmem:[%s321 + $0x160] sm:$0xff]
        %v841 = vld [vmem:[%s321 + $0x168] sm:$0xff]
        %v842 = vld [vmem:[%s321 + $0x170] sm:$0xff]
        %v843 = vld [vmem:[%s321 + $0x178] sm:$0xff]
        %v844 = vld [vmem:[%s321 + $0x180] sm:$0xff]
        %v845 = vld [vmem:[%s321 + $0x188] sm:$0xff]
        %v846 = vld [vmem:[%s321 + $0x190] sm:$0xff]
        %v847 = vld [vmem:[%s321 + $0x198] sm:$0xff]
        %v848 = vld [vmem:[%s321 + $0x1a0] sm:$0xff]
        %v849 = vld [vmem:[%s321 + $0x1a8] sm:$0xff]
        %v850 = vld [vmem:[%s321 + $0x1b0] sm:$0xff]
        %v851 = vld [vmem:[%s321 + $0x1b8] sm:$0xff]
        %v852 = vld [vmem:[%s321 + $0x1c0] sm:$0xff]
        %v853 = vld [vmem:[%s321 + $0x1c8] sm:$0xff]
        %v854 = vld [vmem:[%s321 + $0x1d0] sm:$0xff]
        %v855 = vld [vmem:[%s321 + $0x1d8] sm:$0xff]
        %v856 = vld [vmem:[%s321 + $0x1e0] sm:$0xff]
        %v857 = vld [vmem:[%s321 + $0x1e8] sm:$0xff]
        %v858 = vld [vmem:[%s321 + $0x1f0] sm:$0xff]
        %v859 = vld [vmem:[%s321 + $0x1f8] sm:$0xff]
        %v860 = vld [vmem:[%s321 + $0x200] sm:$0xff]
        %v861 = vld [vmem:[%s321 + $0x208] sm:$0xff]
        %v862 = vld [vmem:[%s321 + $0x210] sm:$0xff]
        %v863 = vld [vmem:[%s321 + $0x218] sm:$0xff]
        %v864 = vld [vmem:[%s321 + $0x220] sm:$0xff]
        %v865 = vld [vmem:[%s321 + $0x228] sm:$0xff]
        %v866 = vld [vmem:[%s321 + $0x230] sm:$0xff]
        %v867 = vld [vmem:[%s321 + $0x238] sm:$0xff]
        %v868 = vld [vmem:[%s321 + $0x240] sm:$0xff]
        %v869 = vld [vmem:[%s321 + $0x248] sm:$0xff]
        %v870 = vld [vmem:[%s321 + $0x250] sm:$0xff]
        %v871 = vld [vmem:[%s321 + $0x258] sm:$0xff]
        %v872 = vld [vmem:[%s321 + $0x260] sm:$0xff]
        %v873 = vld [vmem:[%s321 + $0x268] sm:$0xff]
        %v874 = vld [vmem:[%s321 + $0x270] sm:$0xff]
        %v875 = vld [vmem:[%s321 + $0x278] sm:$0xff]
        %v876 = vld [vmem:[%s321 + $0x280] sm:$0xff]
        %v877 = vld [vmem:[%s321 + $0x288] sm:$0xff]
        %v878 = vld [vmem:[%s321 + $0x290] sm:$0xff]
        %v879 = vld [vmem:[%s321 + $0x298] sm:$0xff]
        %v880 = vld [vmem:[%s321 + $0x2a0] sm:$0xff]
        %v881 = vld [vmem:[%s321 + $0x2a8] sm:$0xff]
        %v882 = vld [vmem:[%s321 + $0x2b0] sm:$0xff]
        %v883 = vld [vmem:[%s321 + $0x2b8] sm:$0xff]
        %v884 = vld [vmem:[%s321 + $0x2c0] sm:$0xff]
        %v885 = vld [vmem:[%s321 + $0x2c8] sm:$0xff]
        %v886 = vld [vmem:[%s321 + $0x2d0] sm:$0xff]
        %v887 = vld [vmem:[%s321 + $0x2d8] sm:$0xff]
        %v888 = vld [vmem:[%s321 + $0x2e0] sm:$0xff]
        %v889 = vld [vmem:[%s321 + $0x2e8] sm:$0xff]
        %v890 = vld [vmem:[%s321 + $0x2f0] sm:$0xff]
        %v891 = vld [vmem:[%s321 + $0x2f8] sm:$0xff]
        %v892 = vld [vmem:[%s321 + $0x300] sm:$0xff]
        %v893 = vld [vmem:[%s321 + $0x308] sm:$0xff]
        %v894 = vld [vmem:[%s321 + $0x310] sm:$0xff]
        %v895 = vld [vmem:[%s321 + $0x318] sm:$0xff]
        %v896 = vld [vmem:[%s321 + $0x320] sm:$0xff]
        %v897 = vld [vmem:[%s321 + $0x328] sm:$0xff]
        %v898 = vld [vmem:[%s321 + $0x330] sm:$0xff]
        %v899 = vld [vmem:[%s321 + $0x338] sm:$0xff]
        %v900 = vld [vmem:[%s321 + $0x340] sm:$0xff]
        %v901 = vld [vmem:[%s321 + $0x348] sm:$0xff]
        %v902 = vld [vmem:[%s321 + $0x350] sm:$0xff]
        %v903 = vld [vmem:[%s321 + $0x358] sm:$0xff]
        %v904 = vld [vmem:[%s321 + $0x360] sm:$0xff]
        %v905 = vld [vmem:[%s321 + $0x368] sm:$0xff]
        %v906 = vld [vmem:[%s321 + $0x370] sm:$0xff]
        %v907 = vld [vmem:[%s321 + $0x378] sm:$0xff]
        %v908 = vld [vmem:[%s321 + $0x380] sm:$0xff]
        %v909 = vld [vmem:[%s321 + $0x388] sm:$0xff]
        %v910 = vld [vmem:[%s321 + $0x390] sm:$0xff]
        %v911 = vld [vmem:[%s321 + $0x398] sm:$0xff]
        %v912 = vld [vmem:[%s321 + $0x3a0] sm:$0xff]
        %v913 = vld [vmem:[%s321 + $0x3a8] sm:$0xff]
        %v914 = vld [vmem:[%s321 + $0x3b0] sm:$0xff]
        %v915 = vld [vmem:[%s321 + $0x3b8] sm:$0xff]
        %v916 = vld [vmem:[%s321 + $0x3c0] sm:$0xff]
        %v917 = vld [vmem:[%s321 + $0x3c8] sm:$0xff]
        %v918 = vld [vmem:[%s321 + $0x3d0] sm:$0xff]
        %v919 = vld [vmem:[%s321 + $0x3d8] sm:$0xff]
        %v920 = vld [vmem:[%s321 + $0x3e0] sm:$0xff]
        %v921 = vld [vmem:[%s321 + $0x3e8] sm:$0xff]
        %v922 = vld [vmem:[%s321 + $0x3f0] sm:$0xff]
        %v923 = vld [vmem:[%s321 + $0x3f8] sm:$0xff]
        %v924 = vld [vmem:[%s321 + $0x400] sm:$0xff]
        %v925 = vld [vmem:[%s321 + $0x408] sm:$0xff]
        %v926 = vld [vmem:[%s321 + $0x410] sm:$0xff]
        %v927 = vld [vmem:[%s321 + $0x418] sm:$0xff]
        %v928 = vld [vmem:[%s321 + $0x420] sm:$0xff]
        %v929 = vld [vmem:[%s321 + $0x428] sm:$0xff]
        %v930 = vld [vmem:[%s321 + $0x430] sm:$0xff]
        %v931 = vld [vmem:[%s321 + $0x438] sm:$0xff]
        %v932 = vld [vmem:[%s321 + $0x440] sm:$0xff]
        %v933 = vld [vmem:[%s321 + $0x448] sm:$0xff]
        %v934 = vld [vmem:[%s321 + $0x450] sm:$0xff]
        %v935 = vld [vmem:[%s321 + $0x458] sm:$0xff]
        %v936 = vld [vmem:[%s321 + $0x460] sm:$0xff]
        %v937 = vld [vmem:[%s321 + $0x468] sm:$0xff]
        %v938 = vld [vmem:[%s321 + $0x470] sm:$0xff]
        %v939 = vld [vmem:[%s321 + $0x478] sm:$0xff]
        %v940 = vld [vmem:[%s321 + $0x480] sm:$0xff]
        %v941 = vld [vmem:[%s321 + $0x488] sm:$0xff]
        %v942 = vld [vmem:[%s321 + $0x490] sm:$0xff]
        %v943 = vld [vmem:[%s321 + $0x498] sm:$0xff]
        %v944 = vld [vmem:[%s321 + $0x4a0] sm:$0xff]
        %v945 = vld [vmem:[%s321 + $0x4a8] sm:$0xff]
        %v946 = vld [vmem:[%s321 + $0x4b0] sm:$0xff]
        %v947 = vld [vmem:[%s321 + $0x4b8] sm:$0xff]
        %v948 = vld [vmem:[%s321 + $0x4c0] sm:$0xff]
        %v949 = vld [vmem:[%s321 + $0x4c8] sm:$0xff]
        %v950 = vld [vmem:[%s321 + $0x4d0] sm:$0xff]
        %v951 = vld [vmem:[%s321 + $0x4d8] sm:$0xff]
        %v952 = vld [vmem:[%s321 + $0x4e0] sm:$0xff]
        %v953 = vld [vmem:[%s321 + $0x4e8] sm:$0xff]
        %v954 = vld [vmem:[%s321 + $0x4f0] sm:$0xff]
        %v955 = vld [vmem:[%s321 + $0x4f8] sm:$0xff]
        %v956 = vadd.f32 %v796, %v806
        %v957 = vadd.f32 %v956, %v816
        %v958 = vadd.f32 %v957, %v826
        %v959 = vadd.f32 %v958, %v836
        %v960 = vadd.f32 %v959, %v846
        %v961 = vadd.f32 %v960, %v856
        %v962 = vadd.f32 %v961, %v866
        %v963 = vadd.f32 %v962, %v876
        %v964 = vadd.f32 %v963, %v886
        %v965 = vadd.f32 %v964, %v896
        %v966 = vadd.f32 %v965, %v906
        %v967 = vadd.f32 %v966, %v916
        %v968 = vadd.f32 %v967, %v926
        %v969 = vadd.f32 %v968, %v936
        %v970 = vadd.f32 %v969, %v946
        %v971 = vrot.slane %v970, 4
        %v972 = vadd.f32 %v970, %v971
        %v973 = vrot.slane %v972, 2
        %v974 = vadd.f32 %v972, %v973
        %v975 = vrot.slane %v974, 1
        %v976 = vadd.f32 %v974, %v975
        %v977 = vadd.f32 %v797, %v807
        %v978 = vadd.f32 %v977, %v817
        %v979 = vadd.f32 %v978, %v827
        %v980 = vadd.f32 %v979, %v837
        %v981 = vadd.f32 %v980, %v847
        %v982 = vadd.f32 %v981, %v857
        %v983 = vadd.f32 %v982, %v867
        %v984 = vadd.f32 %v983, %v877
        %v985 = vadd.f32 %v984, %v887
        %v986 = vadd.f32 %v985, %v897
        %v987 = vadd.f32 %v986, %v907
        %v988 = vadd.f32 %v987, %v917
        %v989 = vadd.f32 %v988, %v927
        %v990 = vadd.f32 %v989, %v937
        %v991 = vadd.f32 %v990, %v947
        %v992 = vrot.slane %v991, 4
        %v993 = vadd.f32 %v991, %v992
        %v994 = vrot.slane %v993, 2
        %v995 = vadd.f32 %v993, %v994
        %v996 = vrot.slane %v995, 1
        %v997 = vadd.f32 %v995, %v996
        %v998 = vadd.f32 %v798, %v808
        %v999 = vadd.f32 %v998, %v818
        %v1000 = vadd.f32 %v999, %v828
        %v1001 = vadd.f32 %v1000, %v838
        %v1002 = vadd.f32 %v1001, %v848
        %v1003 = vadd.f32 %v1002, %v858
        %v1004 = vadd.f32 %v1003, %v868
        %v1005 = vadd.f32 %v1004, %v878
        %v1006 = vadd.f32 %v1005, %v888
        %v1007 = vadd.f32 %v1006, %v898
        %v1008 = vadd.f32 %v1007, %v908
        %v1009 = vadd.f32 %v1008, %v918
        %v1010 = vadd.f32 %v1009, %v928
        %v1011 = vadd.f32 %v1010, %v938
        %v1012 = vadd.f32 %v1011, %v948
        %v1013 = vrot.slane %v1012, 4
        %v1014 = vadd.f32 %v1012, %v1013
        %v1015 = vrot.slane %v1014, 2
        %v1016 = vadd.f32 %v1014, %v1015
        %v1017 = vrot.slane %v1016, 1
        %v1018 = vadd.f32 %v1016, %v1017
        %v1019 = vadd.f32 %v799, %v809
        %v1020 = vadd.f32 %v1019, %v819
        %v1021 = vadd.f32 %v1020, %v829
        %v1022 = vadd.f32 %v1021, %v839
        %v1023 = vadd.f32 %v1022, %v849
        %v1024 = vadd.f32 %v1023, %v859
        %v1025 = vadd.f32 %v1024, %v869
        %v1026 = vadd.f32 %v1025, %v879
        %v1027 = vadd.f32 %v1026, %v889
        %v1028 = vadd.f32 %v1027, %v899
        %v1029 = vadd.f32 %v1028, %v909
        %v1030 = vadd.f32 %v1029, %v919
        %v1031 = vadd.f32 %v1030, %v929
        %v1032 = vadd.f32 %v1031, %v939
        %v1033 = vadd.f32 %v1032, %v949
        %v1034 = vrot.slane %v1033, 4
        %v1035 = vadd.f32 %v1033, %v1034
        %v1036 = vrot.slane %v1035, 2
        %v1037 = vadd.f32 %v1035, %v1036
        %v1038 = vrot.slane %v1037, 1
        %v1039 = vadd.f32 %v1037, %v1038
        %v1040 = vadd.f32 %v800, %v810
        %v1041 = vadd.f32 %v1040, %v820
        %v1042 = vadd.f32 %v1041, %v830
        %v1043 = vadd.f32 %v1042, %v840
        %v1044 = vadd.f32 %v1043, %v850
        %v1045 = vadd.f32 %v1044, %v860
        %v1046 = vadd.f32 %v1045, %v870
        %v1047 = vadd.f32 %v1046, %v880
        %v1048 = vadd.f32 %v1047, %v890
        %v1049 = vadd.f32 %v1048, %v900
        %v1050 = vadd.f32 %v1049, %v910
        %v1051 = vadd.f32 %v1050, %v920
        %v1052 = vadd.f32 %v1051, %v930
        %v1053 = vadd.f32 %v1052, %v940
        %v1054 = vadd.f32 %v1053, %v950
        %v1055 = vrot.slane %v1054, 4
        %v1056 = vadd.f32 %v1054, %v1055
        %v1057 = vrot.slane %v1056, 2
        %v1058 = vadd.f32 %v1056, %v1057
        %v1059 = vrot.slane %v1058, 1
        %v1060 = vadd.f32 %v1058, %v1059
        %v1061 = vadd.f32 %v801, %v811
        %v1062 = vadd.f32 %v1061, %v821
        %v1063 = vadd.f32 %v1062, %v831
        %v1064 = vadd.f32 %v1063, %v841
        %v1065 = vadd.f32 %v1064, %v851
        %v1066 = vadd.f32 %v1065, %v861
        %v1067 = vadd.f32 %v1066, %v871
        %v1068 = vadd.f32 %v1067, %v881
        %v1069 = vadd.f32 %v1068, %v891
        %v1070 = vadd.f32 %v1069, %v901
        %v1071 = vadd.f32 %v1070, %v911
        %v1072 = vadd.f32 %v1071, %v921
        %v1073 = vadd.f32 %v1072, %v931
        %v1074 = vadd.f32 %v1073, %v941
        %v1075 = vadd.f32 %v1074, %v951
        %v1076 = vrot.slane %v1075, 4
        %v1077 = vadd.f32 %v1075, %v1076
        %v1078 = vrot.slane %v1077, 2
        %v1079 = vadd.f32 %v1077, %v1078
        %v1080 = vrot.slane %v1079, 1
        %v1081 = vadd.f32 %v1079, %v1080
        %v1082 = vadd.f32 %v802, %v812
        %v1083 = vadd.f32 %v1082, %v822
        %v1084 = vadd.f32 %v1083, %v832
        %v1085 = vadd.f32 %v1084, %v842
        %v1086 = vadd.f32 %v1085, %v852
        %v1087 = vadd.f32 %v1086, %v862
        %v1088 = vadd.f32 %v1087, %v872
        %v1089 = vadd.f32 %v1088, %v882
        %v1090 = vadd.f32 %v1089, %v892
        %v1091 = vadd.f32 %v1090, %v902
        %v1092 = vadd.f32 %v1091, %v912
        %v1093 = vadd.f32 %v1092, %v922
        %v1094 = vadd.f32 %v1093, %v932
        %v1095 = vadd.f32 %v1094, %v942
        %v1096 = vadd.f32 %v1095, %v952
        %v1097 = vrot.slane %v1096, 4
        %v1098 = vadd.f32 %v1096, %v1097
        %v1099 = vrot.slane %v1098, 2
        %v1100 = vadd.f32 %v1098, %v1099
        %v1101 = vrot.slane %v1100, 1
        %v1102 = vadd.f32 %v1100, %v1101
        %v1103 = vadd.f32 %v803, %v813
        %v1104 = vadd.f32 %v1103, %v823
        %v1105 = vadd.f32 %v1104, %v833
        %v1106 = vadd.f32 %v1105, %v843
        %v1107 = vadd.f32 %v1106, %v853
        %v1108 = vadd.f32 %v1107, %v863
        %v1109 = vadd.f32 %v1108, %v873
        %v1110 = vadd.f32 %v1109, %v883
        %v1111 = vadd.f32 %v1110, %v893
        %v1112 = vadd.f32 %v1111, %v903
        %v1113 = vadd.f32 %v1112, %v913
        %v1114 = vadd.f32 %v1113, %v923
        %v1115 = vadd.f32 %v1114, %v933
        %v1116 = vadd.f32 %v1115, %v943
        %v1117 = vadd.f32 %v1116, %v953
        %v1118 = vrot.slane %v1117, 4
        %v1119 = vadd.f32 %v1117, %v1118
        %v1120 = vrot.slane %v1119, 2
        %v1121 = vadd.f32 %v1119, %v1120
        %v1122 = vrot.slane %v1121, 1
        %v1123 = vadd.f32 %v1121, %v1122
        %v1124 = vadd.f32 %v804, %v814
        %v1125 = vadd.f32 %v1124, %v824
        %v1126 = vadd.f32 %v1125, %v834
        %v1127 = vadd.f32 %v1126, %v844
        %v1128 = vadd.f32 %v1127, %v854
        %v1129 = vadd.f32 %v1128, %v864
        %v1130 = vadd.f32 %v1129, %v874
        %v1131 = vadd.f32 %v1130, %v884
        %v1132 = vadd.f32 %v1131, %v894
        %v1133 = vadd.f32 %v1132, %v904
        %v1134 = vadd.f32 %v1133, %v914
        %v1135 = vadd.f32 %v1134, %v924
        %v1136 = vadd.f32 %v1135, %v934
        %v1137 = vadd.f32 %v1136, %v944
        %v1138 = vadd.f32 %v1137, %v954
        %v1139 = vrot.slane %v1138, 4
        %v1140 = vadd.f32 %v1138, %v1139
        %v1141 = vrot.slane %v1140, 2
        %v1142 = vadd.f32 %v1140, %v1141
        %v1143 = vrot.slane %v1142, 1
        %v1144 = vadd.f32 %v1142, %v1143
        %v1145 = vadd.f32 %v805, %v815
        %v1146 = vadd.f32 %v1145, %v825
        %v1147 = vadd.f32 %v1146, %v835
        %v1148 = vadd.f32 %v1147, %v845
        %v1149 = vadd.f32 %v1148, %v855
        %v1150 = vadd.f32 %v1149, %v865
        %v1151 = vadd.f32 %v1150, %v875
        %v1152 = vadd.f32 %v1151, %v885
        %v1153 = vadd.f32 %v1152, %v895
        %v1154 = vadd.f32 %v1153, %v905
        %v1155 = vadd.f32 %v1154, %v915
        %v1156 = vadd.f32 %v1155, %v925
        %v1157 = vadd.f32 %v1156, %v935
        %v1158 = vadd.f32 %v1157, %v945
        %v1159 = vadd.f32 %v1158, %v955
        %v1160 = vrot.slane %v1159, 4
        %v1161 = vadd.f32 %v1159, %v1160
        %v1162 = vrot.slane %v1161, 2
        %v1163 = vadd.f32 %v1161, %v1162
        %v1164 = vrot.slane %v1163, 1
        %v1165 = vadd.f32 %v1163, %v1164
        %v1176 = vrot.slane %v997, 7
        %v1177 = vrot.slane %v1018, 6
        %v1178 = vrot.slane %v1039, 5
        %v1179 = vrot.slane %v1060, 4
        %v1180 = vrot.slane %v1081, 3
        %v1181 = vrot.slane %v1102, 2
        %v1182 = vrot.slane %v1123, 1
        %v1183 = vrot.slane %v1165, 7
        %v1184 = vsel %vm767, %v976, %v1176
        %v1185 = vsel %vm769, %v1177, %v1178
        %v1186 = vsel %vm771, %v1184, %v1185
        %v1187 = vsel %vm773, %v1179, %v1180
        %v1188 = vsel %vm775, %v1181, %v1182
        %v1189 = vsel %vm777, %v1187, %v1188
        %v1190 = vsel %vm779, %v1186, %v1189
        %v1191 = vsel %vm767, %v1144, %v1183
        %v1194 = vadd.f32 %v793, %v1190
        %v1195 = vadd.f32 %v795, %v1191
        %1196 = vst [vmem:[%s792] ss:$2 sm:$0xff] %v1194
        %1197 = vst.msk [vmem:[%s794] ss:$2 sm:$0x3] %vm790, %v1195
        %p1198 = scmp.eq.s32.totalorder %s31, 1
        // Predicated region
        $region65: #{tpu_custom_call.1} parent=43 // pred_check
          %p1199 = pneg %p1198
        $region66: #{tpu_custom_call.1} parent=43 // pred_check_branch
          %1201 = sbr.rel (%p1199) target = $region68
        $region67: #{tpu_custom_call.1} parent=43 // pred_region
          %v1202 = vld [vmem:[#allocation2] sm:$0xff]
          %v1203 = vld [vmem:[#allocation2 + $0x8] sm:$0xff]
          %v1204 = vld [vmem:[#allocation2 + $0x10] sm:$0xf]
          %v1205 = vmul.f32 %v1202, 0.00390625
          %v1206 = vmul.f32 %v1203, 0.00390625
          %v1207 = vmul.f32 %v1204, 0.00390625
          %v1208 = vld [vmem:[#allocation8] sm:$0xff]
          %v1209 = vld [vmem:[#allocation8 + $0x8] sm:$0xff]
          %v1210 = vld [vmem:[#allocation8 + $0x10] sm:$0xff]
          %v1211 = vld [vmem:[#allocation8 + $0x18] sm:$0xff]
          %v1212 = vld [vmem:[#allocation8 + $0x20] sm:$0xff]
          %v1213 = vld [vmem:[#allocation8 + $0x28] sm:$0xff]
          %v1214 = vld [vmem:[#allocation8 + $0x30] sm:$0xff]
          %v1215 = vld [vmem:[#allocation8 + $0x38] sm:$0xff]
          %v1216 = vld [vmem:[#allocation8 + $0x40] sm:$0xff]
          %v1217 = vld [vmem:[#allocation8 + $0x48] sm:$0xff]
          %v1218 = vld [vmem:[#allocation8 + $0x50] sm:$0xff]
          %v1219 = vld [vmem:[#allocation8 + $0x58] sm:$0xff]
          %v1220 = vld [vmem:[#allocation8 + $0x60] sm:$0xff]
          %v1221 = vld [vmem:[#allocation8 + $0x68] sm:$0xff]
          %v1222 = vld [vmem:[#allocation8 + $0x70] sm:$0xff]
          %v1223 = vld [vmem:[#allocation8 + $0x78] sm:$0xff]
          %v1224 = vld [vmem:[#allocation8 + $0x80] sm:$0xff]
          %v1225 = vld [vmem:[#allocation8 + $0x88] sm:$0xff]
          %v1226 = vld [vmem:[#allocation8 + $0x90] sm:$0xff]
          %v1227 = vld [vmem:[#allocation8 + $0x98] sm:$0xff]
          %v1228 = vld [vmem:[#allocation8 + $0xa0] sm:$0xff]
          %v1229 = vld [vmem:[#allocation8 + $0xa8] sm:$0xff]
          %v1230 = vld [vmem:[#allocation8 + $0xb0] sm:$0xff]
          %v1231 = vld [vmem:[#allocation8 + $0xb8] sm:$0xff]
          %v1232 = vld [vmem:[#allocation8 + $0xc0] sm:$0xff]
          %v1233 = vld [vmem:[#allocation8 + $0xc8] sm:$0xff]
          %v1234 = vld [vmem:[#allocation8 + $0xd0] sm:$0xff]
          %v1235 = vld [vmem:[#allocation8 + $0xd8] sm:$0xff]
          %v1236 = vld [vmem:[#allocation8 + $0xe0] sm:$0xff]
          %v1237 = vld [vmem:[#allocation8 + $0xe8] sm:$0xff]
          %v1238 = vld [vmem:[#allocation8 + $0xf0] sm:$0xff]
          %v1239 = vld [vmem:[#allocation8 + $0xf8] sm:$0xff]
          %v1240 = vld [vmem:[#allocation8 + $0x100] sm:$0xff]
          %v1241 = vld [vmem:[#allocation8 + $0x108] sm:$0xff]
          %v1242 = vld [vmem:[#allocation8 + $0x110] sm:$0xff]
          %v1243 = vld [vmem:[#allocation8 + $0x118] sm:$0xff]
          %v1244 = vld [vmem:[#allocation8 + $0x120] sm:$0xff]
          %v1245 = vld [vmem:[#allocation8 + $0x128] sm:$0xff]
          %v1246 = vld [vmem:[#allocation8 + $0x130] sm:$0xff]
          %v1247 = vld [vmem:[#allocation8 + $0x138] sm:$0xff]
          %v1248 = vld [vmem:[#allocation8 + $0x140] sm:$0xff]
          %v1249 = vld [vmem:[#allocation8 + $0x148] sm:$0xff]
          %v1250 = vld [vmem:[#allocation8 + $0x150] sm:$0xff]
          %v1251 = vld [vmem:[#allocation8 + $0x158] sm:$0xff]
          %v1252 = vld [vmem:[#allocation8 + $0x160] sm:$0xff]
          %v1253 = vld [vmem:[#allocation8 + $0x168] sm:$0xff]
          %v1254 = vld [vmem:[#allocation8 + $0x170] sm:$0xff]
          %v1255 = vld [vmem:[#allocation8 + $0x178] sm:$0xff]
          %v1256 = vld [vmem:[#allocation8 + $0x180] sm:$0xff]
          %v1257 = vld [vmem:[#allocation8 + $0x188] sm:$0xff]
          %v1258 = vld [vmem:[#allocation8 + $0x190] sm:$0xff]
          %v1259 = vld [vmem:[#allocation8 + $0x198] sm:$0xff]
          %v1260 = vld [vmem:[#allocation8 + $0x1a0] sm:$0xff]
          %v1261 = vld [vmem:[#allocation8 + $0x1a8] sm:$0xff]
          %v1262 = vld [vmem:[#allocation8 + $0x1b0] sm:$0xff]
          %v1263 = vld [vmem:[#allocation8 + $0x1b8] sm:$0xff]
          %v1264 = vld [vmem:[#allocation8 + $0x1c0] sm:$0xff]
          %v1265 = vld [vmem:[#allocation8 + $0x1c8] sm:$0xff]
          %v1266 = vld [vmem:[#allocation8 + $0x1d0] sm:$0xff]
          %v1267 = vld [vmem:[#allocation8 + $0x1d8] sm:$0xff]
          %v1268 = vld [vmem:[#allocation8 + $0x1e0] sm:$0xff]
          %v1269 = vld [vmem:[#allocation8 + $0x1e8] sm:$0xff]
          %v1270 = vld [vmem:[#allocation8 + $0x1f0] sm:$0xff]
          %v1271 = vld [vmem:[#allocation8 + $0x1f8] sm:$0xff]
          %v1272 = vld [vmem:[#allocation8 + $0x200] sm:$0xff]
          %v1273 = vld [vmem:[#allocation8 + $0x208] sm:$0xff]
          %v1274 = vld [vmem:[#allocation8 + $0x210] sm:$0xff]
          %v1275 = vld [vmem:[#allocation8 + $0x218] sm:$0xff]
          %v1276 = vld [vmem:[#allocation8 + $0x220] sm:$0xff]
          %v1277 = vld [vmem:[#allocation8 + $0x228] sm:$0xff]
          %v1278 = vld [vmem:[#allocation8 + $0x230] sm:$0xff]
          %v1279 = vld [vmem:[#allocation8 + $0x238] sm:$0xff]
          %v1280 = vld [vmem:[#allocation8 + $0x240] sm:$0xff]
          %v1281 = vld [vmem:[#allocation8 + $0x248] sm:$0xff]
          %v1282 = vld [vmem:[#allocation8 + $0x250] sm:$0xff]
          %v1283 = vld [vmem:[#allocation8 + $0x258] sm:$0xff]
          %v1284 = vld [vmem:[#allocation8 + $0x260] sm:$0xff]
          %v1285 = vld [vmem:[#allocation8 + $0x268] sm:$0xff]
          %v1286 = vld [vmem:[#allocation8 + $0x270] sm:$0xff]
          %v1287 = vld [vmem:[#allocation8 + $0x278] sm:$0xff]
          %v1288 = vld [vmem:[#allocation8 + $0x280] sm:$0xff]
          %v1289 = vld [vmem:[#allocation8 + $0x288] sm:$0xff]
          %v1290 = vld [vmem:[#allocation8 + $0x290] sm:$0xff]
          %v1291 = vld [vmem:[#allocation8 + $0x298] sm:$0xff]
          %v1292 = vld [vmem:[#allocation8 + $0x2a0] sm:$0xff]
          %v1293 = vld [vmem:[#allocation8 + $0x2a8] sm:$0xff]
          %v1294 = vld [vmem:[#allocation8 + $0x2b0] sm:$0xff]
          %v1295 = vld [vmem:[#allocation8 + $0x2b8] sm:$0xff]
          %v1296 = vld [vmem:[#allocation8 + $0x2c0] sm:$0xff]
          %v1297 = vld [vmem:[#allocation8 + $0x2c8] sm:$0xff]
          %v1298 = vld [vmem:[#allocation8 + $0x2d0] sm:$0xff]
          %v1299 = vld [vmem:[#allocation8 + $0x2d8] sm:$0xff]
          %v1300 = vld [vmem:[#allocation8 + $0x2e0] sm:$0xff]
          %v1301 = vld [vmem:[#allocation8 + $0x2e8] sm:$0xff]
          %v1302 = vld [vmem:[#allocation8 + $0x2f0] sm:$0xff]
          %v1303 = vld [vmem:[#allocation8 + $0x2f8] sm:$0xff]
          %v1304 = vld [vmem:[#allocation8 + $0x300] sm:$0xff]
          %v1305 = vld [vmem:[#allocation8 + $0x308] sm:$0xff]
          %v1306 = vld [vmem:[#allocation8 + $0x310] sm:$0xff]
          %v1307 = vld [vmem:[#allocation8 + $0x318] sm:$0xff]
          %v1308 = vld [vmem:[#allocation8 + $0x320] sm:$0xff]
          %v1309 = vld [vmem:[#allocation8 + $0x328] sm:$0xff]
          %v1310 = vld [vmem:[#allocation8 + $0x330] sm:$0xff]
          %v1311 = vld [vmem:[#allocation8 + $0x338] sm:$0xff]
          %v1312 = vld [vmem:[#allocation8 + $0x340] sm:$0xff]
          %v1313 = vld [vmem:[#allocation8 + $0x348] sm:$0xff]
          %v1314 = vld [vmem:[#allocation8 + $0x350] sm:$0xff]
          %v1315 = vld [vmem:[#allocation8 + $0x358] sm:$0xff]
          %v1316 = vld [vmem:[#allocation8 + $0x360] sm:$0xff]
          %v1317 = vld [vmem:[#allocation8 + $0x368] sm:$0xff]
          %v1318 = vld [vmem:[#allocation8 + $0x370] sm:$0xff]
          %v1319 = vld [vmem:[#allocation8 + $0x378] sm:$0xff]
          %v1320 = vld [vmem:[#allocation8 + $0x380] sm:$0xff]
          %v1321 = vld [vmem:[#allocation8 + $0x388] sm:$0xff]
          %v1322 = vld [vmem:[#allocation8 + $0x390] sm:$0xff]
          %v1323 = vld [vmem:[#allocation8 + $0x398] sm:$0xff]
          %v1324 = vld [vmem:[#allocation8 + $0x3a0] sm:$0xff]
          %v1325 = vld [vmem:[#allocation8 + $0x3a8] sm:$0xff]
          %v1326 = vld [vmem:[#allocation8 + $0x3b0] sm:$0xff]
          %v1327 = vld [vmem:[#allocation8 + $0x3b8] sm:$0xff]
          %v1328 = vld [vmem:[#allocation8 + $0x3c0] sm:$0xff]
          %v1329 = vld [vmem:[#allocation8 + $0x3c8] sm:$0xff]
          %v1330 = vld [vmem:[#allocation8 + $0x3d0] sm:$0xff]
          %v1331 = vld [vmem:[#allocation8 + $0x3d8] sm:$0xff]
          %v1332 = vld [vmem:[#allocation8 + $0x3e0] sm:$0xff]
          %v1333 = vld [vmem:[#allocation8 + $0x3e8] sm:$0xff]
          %v1334 = vld [vmem:[#allocation8 + $0x3f0] sm:$0xff]
          %v1335 = vld [vmem:[#allocation8 + $0x3f8] sm:$0xff]
          %v1336 = vld [vmem:[#allocation8 + $0x400] sm:$0xff]
          %v1337 = vld [vmem:[#allocation8 + $0x408] sm:$0xff]
          %v1338 = vld [vmem:[#allocation8 + $0x410] sm:$0xff]
          %v1339 = vld [vmem:[#allocation8 + $0x418] sm:$0xff]
          %v1340 = vld [vmem:[#allocation8 + $0x420] sm:$0xff]
          %v1341 = vld [vmem:[#allocation8 + $0x428] sm:$0xff]
          %v1342 = vld [vmem:[#allocation8 + $0x430] sm:$0xff]
          %v1343 = vld [vmem:[#allocation8 + $0x438] sm:$0xff]
          %v1344 = vld [vmem:[#allocation8 + $0x440] sm:$0xff]
          %v1345 = vld [vmem:[#allocation8 + $0x448] sm:$0xff]
          %v1346 = vld [vmem:[#allocation8 + $0x450] sm:$0xff]
          %v1347 = vld [vmem:[#allocation8 + $0x458] sm:$0xff]
          %v1348 = vld [vmem:[#allocation8 + $0x460] sm:$0xff]
          %v1349 = vld [vmem:[#allocation8 + $0x468] sm:$0xff]
          %v1350 = vld [vmem:[#allocation8 + $0x470] sm:$0xff]
          %v1351 = vld [vmem:[#allocation8 + $0x478] sm:$0xff]
          %v1352 = vld [vmem:[#allocation8 + $0x480] sm:$0xff]
          %v1353 = vld [vmem:[#allocation8 + $0x488] sm:$0xff]
          %v1354 = vld [vmem:[#allocation8 + $0x490] sm:$0xff]
          %v1355 = vld [vmem:[#allocation8 + $0x498] sm:$0xff]
          %v1356 = vld [vmem:[#allocation8 + $0x4a0] sm:$0xff]
          %v1357 = vld [vmem:[#allocation8 + $0x4a8] sm:$0xff]
          %v1358 = vld [vmem:[#allocation8 + $0x4b0] sm:$0xff]
          %v1359 = vld [vmem:[#allocation8 + $0x4b8] sm:$0xff]
          %v1360 = vld [vmem:[#allocation8 + $0x4c0] sm:$0xff]
          %v1361 = vld [vmem:[#allocation8 + $0x4c8] sm:$0xff]
          %v1362 = vld [vmem:[#allocation8 + $0x4d0] sm:$0xff]
          %v1363 = vld [vmem:[#allocation8 + $0x4d8] sm:$0xff]
          %v1364 = vld [vmem:[#allocation8 + $0x4e0] sm:$0xff]
          %v1365 = vld [vmem:[#allocation8 + $0x4e8] sm:$0xff]
          %v1366 = vld [vmem:[#allocation8 + $0x4f0] sm:$0xff]
          %v1367 = vld [vmem:[#allocation8 + $0x4f8] sm:$0xff]
          %v1368 = vld [vmem:[#allocation8 + $0x500] sm:$0xff]
          %v1369 = vld [vmem:[#allocation8 + $0x508] sm:$0xff]
          %v1370 = vld [vmem:[#allocation8 + $0x510] sm:$0xff]
          %v1371 = vld [vmem:[#allocation8 + $0x518] sm:$0xff]
          %v1372 = vld [vmem:[#allocation8 + $0x520] sm:$0xff]
          %v1373 = vld [vmem:[#allocation8 + $0x528] sm:$0xff]
          %v1374 = vld [vmem:[#allocation8 + $0x530] sm:$0xff]
          %v1375 = vld [vmem:[#allocation8 + $0x538] sm:$0xff]
          %v1376 = vld [vmem:[#allocation8 + $0x540] sm:$0xff]
          %v1377 = vld [vmem:[#allocation8 + $0x548] sm:$0xff]
          %v1378 = vld [vmem:[#allocation8 + $0x550] sm:$0xff]
          %v1379 = vld [vmem:[#allocation8 + $0x558] sm:$0xff]
          %v1380 = vld [vmem:[#allocation8 + $0x560] sm:$0xff]
          %v1381 = vld [vmem:[#allocation8 + $0x568] sm:$0xff]
          %v1382 = vld [vmem:[#allocation8 + $0x570] sm:$0xff]
          %v1383 = vld [vmem:[#allocation8 + $0x578] sm:$0xff]
          %v1384 = vld [vmem:[#allocation8 + $0x580] sm:$0xff]
          %v1385 = vld [vmem:[#allocation8 + $0x588] sm:$0xff]
          %v1386 = vld [vmem:[#allocation8 + $0x590] sm:$0xff]
          %v1387 = vld [vmem:[#allocation8 + $0x598] sm:$0xff]
          %v1388 = vld [vmem:[#allocation8 + $0x5a0] sm:$0xff]
          %v1389 = vld [vmem:[#allocation8 + $0x5a8] sm:$0xff]
          %v1390 = vld [vmem:[#allocation8 + $0x5b0] sm:$0xff]
          %v1391 = vld [vmem:[#allocation8 + $0x5b8] sm:$0xff]
          %v1392 = vld [vmem:[#allocation8 + $0x5c0] sm:$0xff]
          %v1393 = vld [vmem:[#allocation8 + $0x5c8] sm:$0xff]
          %v1394 = vld [vmem:[#allocation8 + $0x5d0] sm:$0xff]
          %v1395 = vld [vmem:[#allocation8 + $0x5d8] sm:$0xff]
          %v1396 = vld [vmem:[#allocation8 + $0x5e0] sm:$0xff]
          %v1397 = vld [vmem:[#allocation8 + $0x5e8] sm:$0xff]
          %v1398 = vld [vmem:[#allocation8 + $0x5f0] sm:$0xff]
          %v1399 = vld [vmem:[#allocation8 + $0x5f8] sm:$0xff]
          %v1400 = vld [vmem:[#allocation8 + $0x600] sm:$0xff]
          %v1401 = vld [vmem:[#allocation8 + $0x608] sm:$0xff]
          %v1402 = vld [vmem:[#allocation8 + $0x610] sm:$0xff]
          %v1403 = vld [vmem:[#allocation8 + $0x618] sm:$0xff]
          %v1404 = vld [vmem:[#allocation8 + $0x620] sm:$0xff]
          %v1405 = vld [vmem:[#allocation8 + $0x628] sm:$0xff]
          %v1406 = vld [vmem:[#allocation8 + $0x630] sm:$0xff]
          %v1407 = vld [vmem:[#allocation8 + $0x638] sm:$0xff]
          %v1408 = vld [vmem:[#allocation8 + $0x640] sm:$0xff]
          %v1409 = vld [vmem:[#allocation8 + $0x648] sm:$0xff]
          %v1410 = vld [vmem:[#allocation8 + $0x650] sm:$0xff]
          %v1411 = vld [vmem:[#allocation8 + $0x658] sm:$0xff]
          %v1412 = vld [vmem:[#allocation8 + $0x660] sm:$0xff]
          %v1413 = vld [vmem:[#allocation8 + $0x668] sm:$0xff]
          %v1414 = vld [vmem:[#allocation8 + $0x670] sm:$0xff]
          %v1415 = vld [vmem:[#allocation8 + $0x678] sm:$0xff]
          %v1416 = vld [vmem:[#allocation8 + $0x680] sm:$0xff]
          %v1417 = vld [vmem:[#allocation8 + $0x688] sm:$0xff]
          %v1418 = vld [vmem:[#allocation8 + $0x690] sm:$0xff]
          %v1419 = vld [vmem:[#allocation8 + $0x698] sm:$0xff]
          %v1420 = vld [vmem:[#allocation8 + $0x6a0] sm:$0xff]
          %v1421 = vld [vmem:[#allocation8 + $0x6a8] sm:$0xff]
          %v1422 = vld [vmem:[#allocation8 + $0x6b0] sm:$0xff]
          %v1423 = vld [vmem:[#allocation8 + $0x6b8] sm:$0xff]
          %v1424 = vld [vmem:[#allocation8 + $0x6c0] sm:$0xff]
          %v1425 = vld [vmem:[#allocation8 + $0x6c8] sm:$0xff]
          %v1426 = vld [vmem:[#allocation8 + $0x6d0] sm:$0xff]
          %v1427 = vld [vmem:[#allocation8 + $0x6d8] sm:$0xff]
          %v1428 = vld [vmem:[#allocation8 + $0x6e0] sm:$0xff]
          %v1429 = vld [vmem:[#allocation8 + $0x6e8] sm:$0xff]
          %v1430 = vld [vmem:[#allocation8 + $0x6f0] sm:$0xff]
          %v1431 = vld [vmem:[#allocation8 + $0x6f8] sm:$0xff]
          %v1432 = vld [vmem:[#allocation8 + $0x700] sm:$0xff]
          %v1433 = vld [vmem:[#allocation8 + $0x708] sm:$0xff]
          %v1434 = vld [vmem:[#allocation8 + $0x710] sm:$0xff]
          %v1435 = vld [vmem:[#allocation8 + $0x718] sm:$0xff]
          %v1436 = vld [vmem:[#allocation8 + $0x720] sm:$0xff]
          %v1437 = vld [vmem:[#allocation8 + $0x728] sm:$0xff]
          %v1438 = vld [vmem:[#allocation8 + $0x730] sm:$0xff]
          %v1439 = vld [vmem:[#allocation8 + $0x738] sm:$0xff]
          %v1440 = vld [vmem:[#allocation8 + $0x740] sm:$0xff]
          %v1441 = vld [vmem:[#allocation8 + $0x748] sm:$0xff]
          %v1442 = vld [vmem:[#allocation8 + $0x750] sm:$0xff]
          %v1443 = vld [vmem:[#allocation8 + $0x758] sm:$0xff]
          %v1444 = vld [vmem:[#allocation8 + $0x760] sm:$0xff]
          %v1445 = vld [vmem:[#allocation8 + $0x768] sm:$0xff]
          %v1446 = vld [vmem:[#allocation8 + $0x770] sm:$0xff]
          %v1447 = vld [vmem:[#allocation8 + $0x778] sm:$0xff]
          %v1448 = vld [vmem:[#allocation8 + $0x780] sm:$0xff]
          %v1449 = vld [vmem:[#allocation8 + $0x788] sm:$0xff]
          %v1450 = vld [vmem:[#allocation8 + $0x790] sm:$0xff]
          %v1451 = vld [vmem:[#allocation8 + $0x798] sm:$0xff]
          %v1452 = vld [vmem:[#allocation8 + $0x7a0] sm:$0xff]
          %v1453 = vld [vmem:[#allocation8 + $0x7a8] sm:$0xff]
          %v1454 = vld [vmem:[#allocation8 + $0x7b0] sm:$0xff]
          %v1455 = vld [vmem:[#allocation8 + $0x7b8] sm:$0xff]
          %v1456 = vld [vmem:[#allocation8 + $0x7c0] sm:$0xff]
          %v1457 = vld [vmem:[#allocation8 + $0x7c8] sm:$0xff]
          %v1458 = vld [vmem:[#allocation8 + $0x7d0] sm:$0xff]
          %v1459 = vld [vmem:[#allocation8 + $0x7d8] sm:$0xff]
          %v1460 = vld [vmem:[#allocation8 + $0x7e0] sm:$0xff]
          %v1461 = vld [vmem:[#allocation8 + $0x7e8] sm:$0xff]
          %v1462 = vld [vmem:[#allocation8 + $0x7f0] sm:$0xff]
          %v1463 = vld [vmem:[#allocation8 + $0x7f8] sm:$0xff]
          %v1464 = vld [vmem:[#allocation8 + $0x800] sm:$0xff]
          %v1465 = vld [vmem:[#allocation8 + $0x808] sm:$0xff]
          %v1466 = vld [vmem:[#allocation8 + $0x810] sm:$0xff]
          %v1467 = vld [vmem:[#allocation8 + $0x818] sm:$0xff]
          %v1468 = vld [vmem:[#allocation8 + $0x820] sm:$0xff]
          %v1469 = vld [vmem:[#allocation8 + $0x828] sm:$0xff]
          %v1470 = vld [vmem:[#allocation8 + $0x830] sm:$0xff]
          %v1471 = vld [vmem:[#allocation8 + $0x838] sm:$0xff]
          %v1472 = vld [vmem:[#allocation8 + $0x840] sm:$0xff]
          %v1473 = vld [vmem:[#allocation8 + $0x848] sm:$0xff]
          %v1474 = vld [vmem:[#allocation8 + $0x850] sm:$0xff]
          %v1475 = vld [vmem:[#allocation8 + $0x858] sm:$0xff]
          %v1476 = vld [vmem:[#allocation8 + $0x860] sm:$0xff]
          %v1477 = vld [vmem:[#allocation8 + $0x868] sm:$0xff]
          %v1478 = vld [vmem:[#allocation8 + $0x870] sm:$0xff]
          %v1479 = vld [vmem:[#allocation8 + $0x878] sm:$0xff]
          %v1480 = vld [vmem:[#allocation8 + $0x880] sm:$0xff]
          %v1481 = vld [vmem:[#allocation8 + $0x888] sm:$0xff]
          %v1482 = vld [vmem:[#allocation8 + $0x890] sm:$0xff]
          %v1483 = vld [vmem:[#allocation8 + $0x898] sm:$0xff]
          %v1484 = vld [vmem:[#allocation8 + $0x8a0] sm:$0xff]
          %v1485 = vld [vmem:[#allocation8 + $0x8a8] sm:$0xff]
          %v1486 = vld [vmem:[#allocation8 + $0x8b0] sm:$0xff]
          %v1487 = vld [vmem:[#allocation8 + $0x8b8] sm:$0xff]
          %v1488 = vld [vmem:[#allocation8 + $0x8c0] sm:$0xff]
          %v1489 = vld [vmem:[#allocation8 + $0x8c8] sm:$0xff]
          %v1490 = vld [vmem:[#allocation8 + $0x8d0] sm:$0xff]
          %v1491 = vld [vmem:[#allocation8 + $0x8d8] sm:$0xff]
          %v1492 = vld [vmem:[#allocation8 + $0x8e0] sm:$0xff]
          %v1493 = vld [vmem:[#allocation8 + $0x8e8] sm:$0xff]
          %v1494 = vld [vmem:[#allocation8 + $0x8f0] sm:$0xff]
          %v1495 = vld [vmem:[#allocation8 + $0x8f8] sm:$0xff]
          %v1496 = vld [vmem:[#allocation8 + $0x900] sm:$0xff]
          %v1497 = vld [vmem:[#allocation8 + $0x908] sm:$0xff]
          %v1498 = vld [vmem:[#allocation8 + $0x910] sm:$0xff]
          %v1499 = vld [vmem:[#allocation8 + $0x918] sm:$0xff]
          %v1500 = vld [vmem:[#allocation8 + $0x920] sm:$0xff]
          %v1501 = vld [vmem:[#allocation8 + $0x928] sm:$0xff]
          %v1502 = vld [vmem:[#allocation8 + $0x930] sm:$0xff]
          %v1503 = vld [vmem:[#allocation8 + $0x938] sm:$0xff]
          %v1504 = vld [vmem:[#allocation8 + $0x940] sm:$0xff]
          %v1505 = vld [vmem:[#allocation8 + $0x948] sm:$0xff]
          %v1506 = vld [vmem:[#allocation8 + $0x950] sm:$0xff]
          %v1507 = vld [vmem:[#allocation8 + $0x958] sm:$0xff]
          %v1508 = vld [vmem:[#allocation8 + $0x960] sm:$0xff]
          %v1509 = vld [vmem:[#allocation8 + $0x968] sm:$0xff]
          %v1510 = vld [vmem:[#allocation8 + $0x970] sm:$0xff]
          %v1511 = vld [vmem:[#allocation8 + $0x978] sm:$0xff]
          %v1512 = vld [vmem:[#allocation8 + $0x980] sm:$0xff]
          %v1513 = vld [vmem:[#allocation8 + $0x988] sm:$0xff]
          %v1514 = vld [vmem:[#allocation8 + $0x990] sm:$0xff]
          %v1515 = vld [vmem:[#allocation8 + $0x998] sm:$0xff]
          %v1516 = vld [vmem:[#allocation8 + $0x9a0] sm:$0xff]
          %v1517 = vld [vmem:[#allocation8 + $0x9a8] sm:$0xff]
          %v1518 = vld [vmem:[#allocation8 + $0x9b0] sm:$0xff]
          %v1519 = vld [vmem:[#allocation8 + $0x9b8] sm:$0xff]
          %v1520 = vld [vmem:[#allocation8 + $0x9c0] sm:$0xff]
          %v1521 = vld [vmem:[#allocation8 + $0x9c8] sm:$0xff]
          %v1522 = vld [vmem:[#allocation8 + $0x9d0] sm:$0xff]
          %v1523 = vld [vmem:[#allocation8 + $0x9d8] sm:$0xff]
          %v1524 = vld [vmem:[#allocation8 + $0x9e0] sm:$0xff]
          %v1525 = vld [vmem:[#allocation8 + $0x9e8] sm:$0xff]
          %v1526 = vld [vmem:[#allocation8 + $0x9f0] sm:$0xff]
          %v1527 = vld [vmem:[#allocation8 + $0x9f8] sm:$0xff]
          %v1528 = vld [vmem:[#allocation9] sm:$0x3]
          %v1530 = vperm.slane %v1528, 0
          %v1531 = vperm.slane %v1528, 1
          %1537 = vst [vmem:[#allocation1] ss:$4 sm:$0xff] %v1205
          %s1538 = scalar_lea.vmem [#allocation1], 32
          %1539 = vst [vmem:[%s1538] ss:$4 sm:$0xff] %v1206
          %v1540 = vld.sshfl [vmem:[#allocation1] sm:$0xff pattern:$0x73625140]
          %v1541 = vld.sshfl [vmem:[#allocation1 + $0x8] sm:$0xff pattern:$0x73625140]
          %v1542 = vld.sshfl [vmem:[#allocation1 + $0x10] sm:$0xff pattern:$0x73625140]
          %v1543 = vld.sshfl [vmem:[#allocation1 + $0x18] sm:$0xff pattern:$0x73625140]
          %v1544 = vld.sshfl [vmem:[#allocation1 + $0x20] sm:$0xff pattern:$0x73625140]
          %v1545 = vld.sshfl [vmem:[#allocation1 + $0x28] sm:$0xff pattern:$0x73625140]
          %v1546 = vld.sshfl [vmem:[#allocation1 + $0x30] sm:$0xff pattern:$0x73625140]
          %v1547 = vld.sshfl [vmem:[#allocation1 + $0x38] sm:$0xff pattern:$0x73625140]
          %1548 = vst [vmem:[#allocation1] ss:$4 sm:$0xff] %v1207
          %v1549 = vld.sshfl [vmem:[#allocation1] sm:$0xff pattern:$0x73625140]
          %v1550 = vld.sshfl [vmem:[#allocation1 + $0x8] sm:$0xff pattern:$0x73625140]
          %1561 = vmatpush.msra.mxu0 %v1238
          %1562 = vmatpush.msra.mxu0 %v1236
          %1563 = vmatpush.msra.mxu0 %v1234
          %1564 = vmatpush.msra.mxu0 %v1232
          %1565 = vmatpush.msra.mxu0 %v1230
          %1566 = vmatpush.msra.mxu0 %v1228
          %1567 = vmatpush.msra.mxu0 %v1226
          %1568 = vmatpush.msra.mxu0 %v1224
          %1569 = vmatpush.msra.mxu0 %v1222
          %1570 = vmatpush.msra.mxu0 %v1220
          %1571 = vmatpush.msra.mxu0 %v1218
          %1572 = vmatpush.msra.mxu0 %v1216
          %1573 = vmatpush.msra.mxu0 %v1214
          %1574 = vmatpush.msra.mxu0 %v1212
          %1575 = vmatpush.msra.mxu0 %v1210
          %1576 = vmatpush.msra.mxu0 %v1208
          %1577 = vmatmul.f32.gmra.mxu0 %v1540
          %v1578 = vpop.f32.mrf.mxu0
          %v1579 = vadd.f32 %v1530, %v1578
          %1580 = vdwg.mxu0
          %1581 = vmatpush.msra.mxu0 %v1270
          %1582 = vmatpush.msra.mxu0 %v1268
          %1583 = vmatpush.msra.mxu0 %v1266
          %1584 = vmatpush.msra.mxu0 %v1264
          %1585 = vmatpush.msra.mxu0 %v1262
          %1586 = vmatpush.msra.mxu0 %v1260
          %1587 = vmatpush.msra.mxu0 %v1258
          %1588 = vmatpush.msra.mxu0 %v1256
          %1589 = vmatpush.msra.mxu0 %v1254
          %1590 = vmatpush.msra.mxu0 %v1252
          %1591 = vmatpush.msra.mxu0 %v1250
          %1592 = vmatpush.msra.mxu0 %v1248
          %1593 = vmatpush.msra.mxu0 %v1246
          %1594 = vmatpush.msra.mxu0 %v1244
          %1595 = vmatpush.msra.mxu0 %v1242
          %1596 = vmatpush.msra.mxu0 %v1240
          %1597 = vmatmul.f32.gmra.mxu0 %v1541
          %v1598 = vpop.f32.mrf.mxu0
          %v1599 = vadd.f32 %v1579, %v1598
          %1600 = vdwg.mxu0
          %1601 = vmatpush.msra.mxu0 %v1302
          %1602 = vmatpush.msra.mxu0 %v1300
          %1603 = vmatpush.msra.mxu0 %v1298
          %1604 = vmatpush.msra.mxu0 %v1296
          %1605 = vmatpush.msra.mxu0 %v1294
          %1606 = vmatpush.msra.mxu0 %v1292
          %1607 = vmatpush.msra.mxu0 %v1290
          %1608 = vmatpush.msra.mxu0 %v1288
          %1609 = vmatpush.msra.mxu0 %v1286
          %1610 = vmatpush.msra.mxu0 %v1284
          %1611 = vmatpush.msra.mxu0 %v1282
          %1612 = vmatpush.msra.mxu0 %v1280
          %1613 = vmatpush.msra.mxu0 %v1278
          %1614 = vmatpush.msra.mxu0 %v1276
          %1615 = vmatpush.msra.mxu0 %v1274
          %1616 = vmatpush.msra.mxu0 %v1272
          %1617 = vmatmul.f32.gmra.mxu0 %v1542
          %v1618 = vpop.f32.mrf.mxu0
          %v1619 = vadd.f32 %v1599, %v1618
          %1620 = vdwg.mxu0
          %1621 = vmatpush.msra.mxu0 %v1334
          %1622 = vmatpush.msra.mxu0 %v1332
          %1623 = vmatpush.msra.mxu0 %v1330
          %1624 = vmatpush.msra.mxu0 %v1328
          %1625 = vmatpush.msra.mxu0 %v1326
          %1626 = vmatpush.msra.mxu0 %v1324
          %1627 = vmatpush.msra.mxu0 %v1322
          %1628 = vmatpush.msra.mxu0 %v1320
          %1629 = vmatpush.msra.mxu0 %v1318
          %1630 = vmatpush.msra.mxu0 %v1316
          %1631 = vmatpush.msra.mxu0 %v1314
          %1632 = vmatpush.msra.mxu0 %v1312
          %1633 = vmatpush.msra.mxu0 %v1310
          %1634 = vmatpush.msra.mxu0 %v1308
          %1635 = vmatpush.msra.mxu0 %v1306
          %1636 = vmatpush.msra.mxu0 %v1304
          %1637 = vmatmul.f32.gmra.mxu0 %v1543
          %v1638 = vpop.f32.mrf.mxu0
          %v1639 = vadd.f32 %v1619, %v1638
          %1640 = vdwg.mxu0
          %1641 = vmatpush.msra.mxu0 %v1366
          %1642 = vmatpush.msra.mxu0 %v1364
          %1643 = vmatpush.msra.mxu0 %v1362
          %1644 = vmatpush.msra.mxu0 %v1360
          %1645 = vmatpush.msra.mxu0 %v1358
          %1646 = vmatpush.msra.mxu0 %v1356
          %1647 = vmatpush.msra.mxu0 %v1354
          %1648 = vmatpush.msra.mxu0 %v1352
          %1649 = vmatpush.msra.mxu0 %v1350
          %1650 = vmatpush.msra.mxu0 %v1348
          %1651 = vmatpush.msra.mxu0 %v1346
          %1652 = vmatpush.msra.mxu0 %v1344
          %1653 = vmatpush.msra.mxu0 %v1342
          %1654 = vmatpush.msra.mxu0 %v1340
          %1655 = vmatpush.msra.mxu0 %v1338
          %1656 = vmatpush.msra.mxu0 %v1336
          %1657 = vmatmul.f32.gmra.mxu0 %v1544
          %v1658 = vpop.f32.mrf.mxu0
          %v1659 = vadd.f32 %v1639, %v1658
          %1660 = vdwg.mxu0
          %1661 = vmatpush.msra.mxu0 %v1398
          %1662 = vmatpush.msra.mxu0 %v1396
          %1663 = vmatpush.msra.mxu0 %v1394
          %1664 = vmatpush.msra.mxu0 %v1392
          %1665 = vmatpush.msra.mxu0 %v1390
          %1666 = vmatpush.msra.mxu0 %v1388
          %1667 = vmatpush.msra.mxu0 %v1386
          %1668 = vmatpush.msra.mxu0 %v1384
          %1669 = vmatpush.msra.mxu0 %v1382
          %1670 = vmatpush.msra.mxu0 %v1380
          %1671 = vmatpush.msra.mxu0 %v1378
          %1672 = vmatpush.msra.mxu0 %v1376
          %1673 = vmatpush.msra.mxu0 %v1374
          %1674 = vmatpush.msra.mxu0 %v1372
          %1675 = vmatpush.msra.mxu0 %v1370
          %1676 = vmatpush.msra.mxu0 %v1368
          %1677 = vmatmul.f32.gmra.mxu0 %v1545
          %v1678 = vpop.f32.mrf.mxu0
          %v1679 = vadd.f32 %v1659, %v1678
          %1680 = vdwg.mxu0
          %1681 = vmatpush.msra.mxu0 %v1430
          %1682 = vmatpush.msra.mxu0 %v1428
          %1683 = vmatpush.msra.mxu0 %v1426
          %1684 = vmatpush.msra.mxu0 %v1424
          %1685 = vmatpush.msra.mxu0 %v1422
          %1686 = vmatpush.msra.mxu0 %v1420
          %1687 = vmatpush.msra.mxu0 %v1418
          %1688 = vmatpush.msra.mxu0 %v1416
          %1689 = vmatpush.msra.mxu0 %v1414
          %1690 = vmatpush.msra.mxu0 %v1412
          %1691 = vmatpush.msra.mxu0 %v1410
          %1692 = vmatpush.msra.mxu0 %v1408
          %1693 = vmatpush.msra.mxu0 %v1406
          %1694 = vmatpush.msra.mxu0 %v1404
          %1695 = vmatpush.msra.mxu0 %v1402
          %1696 = vmatpush.msra.mxu0 %v1400
          %1697 = vmatmul.f32.gmra.mxu0 %v1546
          %v1698 = vpop.f32.mrf.mxu0
          %v1699 = vadd.f32 %v1679, %v1698
          %1700 = vdwg.mxu0
          %1701 = vmatpush.msra.mxu0 %v1462
          %1702 = vmatpush.msra.mxu0 %v1460
          %1703 = vmatpush.msra.mxu0 %v1458
          %1704 = vmatpush.msra.mxu0 %v1456
          %1705 = vmatpush.msra.mxu0 %v1454
          %1706 = vmatpush.msra.mxu0 %v1452
          %1707 = vmatpush.msra.mxu0 %v1450
          %1708 = vmatpush.msra.mxu0 %v1448
          %1709 = vmatpush.msra.mxu0 %v1446
          %1710 = vmatpush.msra.mxu0 %v1444
          %1711 = vmatpush.msra.mxu0 %v1442
          %1712 = vmatpush.msra.mxu0 %v1440
          %1713 = vmatpush.msra.mxu0 %v1438
          %1714 = vmatpush.msra.mxu0 %v1436
          %1715 = vmatpush.msra.mxu0 %v1434
          %1716 = vmatpush.msra.mxu0 %v1432
          %1717 = vmatmul.f32.gmra.mxu0 %v1547
          %v1718 = vpop.f32.mrf.mxu0
          %v1719 = vadd.f32 %v1699, %v1718
          %1720 = vdwg.mxu0
          %1721 = vmatpush.msra.mxu0 %v1494
          %1722 = vmatpush.msra.mxu0 %v1492
          %1723 = vmatpush.msra.mxu0 %v1490
          %1724 = vmatpush.msra.mxu0 %v1488
          %1725 = vmatpush.msra.mxu0 %v1486
          %1726 = vmatpush.msra.mxu0 %v1484
          %1727 = vmatpush.msra.mxu0 %v1482
          %1728 = vmatpush.msra.mxu0 %v1480
          %1729 = vmatpush.msra.mxu0 %v1478
          %1730 = vmatpush.msra.mxu0 %v1476
          %1731 = vmatpush.msra.mxu0 %v1474
          %1732 = vmatpush.msra.mxu0 %v1472
          %1733 = vmatpush.msra.mxu0 %v1470
          %1734 = vmatpush.msra.mxu0 %v1468
          %1735 = vmatpush.msra.mxu0 %v1466
          %1736 = vmatpush.msra.mxu0 %v1464
          %1737 = vmatmul.f32.gmra.mxu0 %v1549
          %v1738 = vpop.f32.mrf.mxu0
          %v1739 = vadd.f32 %v1719, %v1738
          %1740 = vdwg.mxu0
          %1741 = vmatpush.msra.mxu0 %v1526
          %1742 = vmatpush.msra.mxu0 %v1524
          %1743 = vmatpush.msra.mxu0 %v1522
          %1744 = vmatpush.msra.mxu0 %v1520
          %1745 = vmatpush.msra.mxu0 %v1518
          %1746 = vmatpush.msra.mxu0 %v1516
          %1747 = vmatpush.msra.mxu0 %v1514
          %1748 = vmatpush.msra.mxu0 %v1512
          %1749 = vmatpush.msra.mxu0 %v1510
          %1750 = vmatpush.msra.mxu0 %v1508
          %1751 = vmatpush.msra.mxu0 %v1506
          %1752 = vmatpush.msra.mxu0 %v1504
          %1753 = vmatpush.msra.mxu0 %v1502
          %1754 = vmatpush.msra.mxu0 %v1500
          %1755 = vmatpush.msra.mxu0 %v1498
          %1756 = vmatpush.msra.mxu0 %v1496
          %1757 = vmatmul.f32.gmra.mxu0 %v1550
          %v1758 = vpop.f32.mrf.mxu0
          %v1759 = vadd.f32 %v1739, %v1758
          %1760 = vdwg.mxu0
          %1761 = vmatpush.msra.mxu0 %v1239
          %1762 = vmatpush.msra.mxu0 %v1237
          %1763 = vmatpush.msra.mxu0 %v1235
          %1764 = vmatpush.msra.mxu0 %v1233
          %1765 = vmatpush.msra.mxu0 %v1231
          %1766 = vmatpush.msra.mxu0 %v1229
          %1767 = vmatpush.msra.mxu0 %v1227
          %1768 = vmatpush.msra.mxu0 %v1225
          %1769 = vmatpush.msra.mxu0 %v1223
          %1770 = vmatpush.msra.mxu0 %v1221
          %1771 = vmatpush.msra.mxu0 %v1219
          %1772 = vmatpush.msra.mxu0 %v1217
          %1773 = vmatpush.msra.mxu0 %v1215
          %1774 = vmatpush.msra.mxu0 %v1213
          %1775 = vmatpush.msra.mxu0 %v1211
          %1776 = vmatpush.msra.mxu0 %v1209
          %1777 = vmatmul.f32.gmra.mxu0 %v1540
          %v1778 = vpop.f32.mrf.mxu0
          %v1779 = vadd.f32 %v1531, %v1778
          %1780 = vdwg.mxu0
          %1781 = vmatpush.msra.mxu0 %v1271
          %1782 = vmatpush.msra.mxu0 %v1269
          %1783 = vmatpush.msra.mxu0 %v1267
          %1784 = vmatpush.msra.mxu0 %v1265
          %1785 = vmatpush.msra.mxu0 %v1263
          %1786 = vmatpush.msra.mxu0 %v1261
          %1787 = vmatpush.msra.mxu0 %v1259
          %1788 = vmatpush.msra.mxu0 %v1257
          %1789 = vmatpush.msra.mxu0 %v1255
          %1790 = vmatpush.msra.mxu0 %v1253
          %1791 = vmatpush.msra.mxu0 %v1251
          %1792 = vmatpush.msra.mxu0 %v1249
          %1793 = vmatpush.msra.mxu0 %v1247
          %1794 = vmatpush.msra.mxu0 %v1245
          %1795 = vmatpush.msra.mxu0 %v1243
          %1796 = vmatpush.msra.mxu0 %v1241
          %1797 = vmatmul.f32.gmra.mxu0 %v1541
          %v1798 = vpop.f32.mrf.mxu0
          %v1799 = vadd.f32 %v1779, %v1798
          %1800 = vdwg.mxu0
          %1801 = vmatpush.msra.mxu0 %v1303
          %1802 = vmatpush.msra.mxu0 %v1301
          %1803 = vmatpush.msra.mxu0 %v1299
          %1804 = vmatpush.msra.mxu0 %v1297
          %1805 = vmatpush.msra.mxu0 %v1295
          %1806 = vmatpush.msra.mxu0 %v1293
          %1807 = vmatpush.msra.mxu0 %v1291
          %1808 = vmatpush.msra.mxu0 %v1289
          %1809 = vmatpush.msra.mxu0 %v1287
          %1810 = vmatpush.msra.mxu0 %v1285
          %1811 = vmatpush.msra.mxu0 %v1283
          %1812 = vmatpush.msra.mxu0 %v1281
          %1813 = vmatpush.msra.mxu0 %v1279
          %1814 = vmatpush.msra.mxu0 %v1277
          %1815 = vmatpush.msra.mxu0 %v1275
          %1816 = vmatpush.msra.mxu0 %v1273
          %1817 = vmatmul.f32.gmra.mxu0 %v1542
          %v1818 = vpop.f32.mrf.mxu0
          %v1819 = vadd.f32 %v1799, %v1818
          %1820 = vdwg.mxu0
          %1821 = vmatpush.msra.mxu0 %v1335
          %1822 = vmatpush.msra.mxu0 %v1333
          %1823 = vmatpush.msra.mxu0 %v1331
          %1824 = vmatpush.msra.mxu0 %v1329
          %1825 = vmatpush.msra.mxu0 %v1327
          %1826 = vmatpush.msra.mxu0 %v1325
          %1827 = vmatpush.msra.mxu0 %v1323
          %1828 = vmatpush.msra.mxu0 %v1321
          %1829 = vmatpush.msra.mxu0 %v1319
          %1830 = vmatpush.msra.mxu0 %v1317
          %1831 = vmatpush.msra.mxu0 %v1315
          %1832 = vmatpush.msra.mxu0 %v1313
          %1833 = vmatpush.msra.mxu0 %v1311
          %1834 = vmatpush.msra.mxu0 %v1309
          %1835 = vmatpush.msra.mxu0 %v1307
          %1836 = vmatpush.msra.mxu0 %v1305
          %1837 = vmatmul.f32.gmra.mxu0 %v1543
          %v1838 = vpop.f32.mrf.mxu0
          %v1839 = vadd.f32 %v1819, %v1838
          %1840 = vdwg.mxu0
          %1841 = vmatpush.msra.mxu0 %v1367
          %1842 = vmatpush.msra.mxu0 %v1365
          %1843 = vmatpush.msra.mxu0 %v1363
          %1844 = vmatpush.msra.mxu0 %v1361
          %1845 = vmatpush.msra.mxu0 %v1359
          %1846 = vmatpush.msra.mxu0 %v1357
          %1847 = vmatpush.msra.mxu0 %v1355
          %1848 = vmatpush.msra.mxu0 %v1353
          %1849 = vmatpush.msra.mxu0 %v1351
          %1850 = vmatpush.msra.mxu0 %v1349
          %1851 = vmatpush.msra.mxu0 %v1347
          %1852 = vmatpush.msra.mxu0 %v1345
          %1853 = vmatpush.msra.mxu0 %v1343
          %1854 = vmatpush.msra.mxu0 %v1341
          %1855 = vmatpush.msra.mxu0 %v1339
          %1856 = vmatpush.msra.mxu0 %v1337
          %1857 = vmatmul.f32.gmra.mxu0 %v1544
          %v1858 = vpop.f32.mrf.mxu0
          %v1859 = vadd.f32 %v1839, %v1858
          %1860 = vdwg.mxu0
          %1861 = vmatpush.msra.mxu0 %v1399
          %1862 = vmatpush.msra.mxu0 %v1397
          %1863 = vmatpush.msra.mxu0 %v1395
          %1864 = vmatpush.msra.mxu0 %v1393
          %1865 = vmatpush.msra.mxu0 %v1391
          %1866 = vmatpush.msra.mxu0 %v1389
          %1867 = vmatpush.msra.mxu0 %v1387
          %1868 = vmatpush.msra.mxu0 %v1385
          %1869 = vmatpush.msra.mxu0 %v1383
          %1870 = vmatpush.msra.mxu0 %v1381
          %1871 = vmatpush.msra.mxu0 %v1379
          %1872 = vmatpush.msra.mxu0 %v1377
          %1873 = vmatpush.msra.mxu0 %v1375
          %1874 = vmatpush.msra.mxu0 %v1373
          %1875 = vmatpush.msra.mxu0 %v1371
          %1876 = vmatpush.msra.mxu0 %v1369
          %1877 = vmatmul.f32.gmra.mxu0 %v1545
          %v1878 = vpop.f32.mrf.mxu0
          %v1879 = vadd.f32 %v1859, %v1878
          %1880 = vdwg.mxu0
          %1881 = vmatpush.msra.mxu0 %v1431
          %1882 = vmatpush.msra.mxu0 %v1429
          %1883 = vmatpush.msra.mxu0 %v1427
          %1884 = vmatpush.msra.mxu0 %v1425
          %1885 = vmatpush.msra.mxu0 %v1423
          %1886 = vmatpush.msra.mxu0 %v1421
          %1887 = vmatpush.msra.mxu0 %v1419
          %1888 = vmatpush.msra.mxu0 %v1417
          %1889 = vmatpush.msra.mxu0 %v1415
          %1890 = vmatpush.msra.mxu0 %v1413
          %1891 = vmatpush.msra.mxu0 %v1411
          %1892 = vmatpush.msra.mxu0 %v1409
          %1893 = vmatpush.msra.mxu0 %v1407
          %1894 = vmatpush.msra.mxu0 %v1405
          %1895 = vmatpush.msra.mxu0 %v1403
          %1896 = vmatpush.msra.mxu0 %v1401
          %1897 = vmatmul.f32.gmra.mxu0 %v1546
          %v1898 = vpop.f32.mrf.mxu0
          %v1899 = vadd.f32 %v1879, %v1898
          %1900 = vdwg.mxu0
          %1901 = vmatpush.msra.mxu0 %v1463
          %1902 = vmatpush.msra.mxu0 %v1461
          %1903 = vmatpush.msra.mxu0 %v1459
          %1904 = vmatpush.msra.mxu0 %v1457
          %1905 = vmatpush.msra.mxu0 %v1455
          %1906 = vmatpush.msra.mxu0 %v1453
          %1907 = vmatpush.msra.mxu0 %v1451
          %1908 = vmatpush.msra.mxu0 %v1449
          %1909 = vmatpush.msra.mxu0 %v1447
          %1910 = vmatpush.msra.mxu0 %v1445
          %1911 = vmatpush.msra.mxu0 %v1443
          %1912 = vmatpush.msra.mxu0 %v1441
          %1913 = vmatpush.msra.mxu0 %v1439
          %1914 = vmatpush.msra.mxu0 %v1437
          %1915 = vmatpush.msra.mxu0 %v1435
          %1916 = vmatpush.msra.mxu0 %v1433
          %1917 = vmatmul.f32.gmra.mxu0 %v1547
          %v1918 = vpop.f32.mrf.mxu0
          %v1919 = vadd.f32 %v1899, %v1918
          %1920 = vdwg.mxu0
          %1921 = vmatpush.msra.mxu0 %v1495
          %1922 = vmatpush.msra.mxu0 %v1493
          %1923 = vmatpush.msra.mxu0 %v1491
          %1924 = vmatpush.msra.mxu0 %v1489
          %1925 = vmatpush.msra.mxu0 %v1487
          %1926 = vmatpush.msra.mxu0 %v1485
          %1927 = vmatpush.msra.mxu0 %v1483
          %1928 = vmatpush.msra.mxu0 %v1481
          %1929 = vmatpush.msra.mxu0 %v1479
          %1930 = vmatpush.msra.mxu0 %v1477
          %1931 = vmatpush.msra.mxu0 %v1475
          %1932 = vmatpush.msra.mxu0 %v1473
          %1933 = vmatpush.msra.mxu0 %v1471
          %1934 = vmatpush.msra.mxu0 %v1469
          %1935 = vmatpush.msra.mxu0 %v1467
          %1936 = vmatpush.msra.mxu0 %v1465
          %1937 = vmatmul.f32.gmra.mxu0 %v1549
          %v1938 = vpop.f32.mrf.mxu0
          %v1939 = vadd.f32 %v1919, %v1938
          %1940 = vdwg.mxu0
          %1941 = vmatpush.msra.mxu0 %v1527
          %1942 = vmatpush.msra.mxu0 %v1525
          %1943 = vmatpush.msra.mxu0 %v1523
          %1944 = vmatpush.msra.mxu0 %v1521
          %1945 = vmatpush.msra.mxu0 %v1519
          %1946 = vmatpush.msra.mxu0 %v1517
          %1947 = vmatpush.msra.mxu0 %v1515
          %1948 = vmatpush.msra.mxu0 %v1513
          %1949 = vmatpush.msra.mxu0 %v1511
          %1950 = vmatpush.msra.mxu0 %v1509
          %1951 = vmatpush.msra.mxu0 %v1507
          %1952 = vmatpush.msra.mxu0 %v1505
          %1953 = vmatpush.msra.mxu0 %v1503
          %1954 = vmatpush.msra.mxu0 %v1501
          %1955 = vmatpush.msra.mxu0 %v1499
          %1956 = vmatpush.msra.mxu0 %v1497
          %1957 = vmatmul.f32.gmra.mxu0 %v1550
          %v1958 = vpop.f32.mrf.mxu0
          %v1959 = vadd.f32 %v1939, %v1958
          %1960 = vdwg.mxu0
          %v1961 = vmax.f32 %v1759, 0.0
          %v1962 = vmax.f32 %v1959, 0.0
          %v1963 = vmul.f32 %v1961, %v1961
          %v1964 = vmul.f32 %v1962, %v1962
          %v1965 = vsel %vm771, %v1963, 0.0
          %v1966 = vsel %vm771, %v1964, 0.0
          %v1967 = vadd.f32 %v1965, %v1966
          %1968 = vadd.xlane.f32.xlu0 %v1967
          %v1969 = vpop.xlane.xlu0 %1968
          %v1970 = vrsqrt.pop %v1969
          %v1971 = vmul.f32 %v1970, %v1969
          %v1972 = vmul.f32 %v1971, %v1970
          %v1973 = vmul.f32 0.5, %v1972
          %v1974 = vsub.f32 1.5, %v1973
          %v1975 = vmul.f32 %v1970, %v1974
          %v1976 = vmul.f32 %v1969, %v1975
          %vm1977 = vcmp.eq.f32.partialorder %v1969, inf
          %v1978 = vsel %vm1977, %v1969, %v1976
          %vm1979 = vcmp.eq.f32.partialorder %v1969, 0.0
          %v1980 = vand.u32 %v1969, 2147483648
          %v1981 = vsel %vm1979, %v1980, %v1978
          %v1982 = vmax.f32 %v1981, 1e-12
          %v1983 = vrcp.pop %v1982
          %v1984 = vmul.f32 %v1982, %v1983
          %v1985 = vsub.f32 1.0, %v1984
          %v1986 = vmul.f32 %v1983, %v1985
          %v1987 = vadd.f32 %v1983, %v1986
          %vm1988 = vweird.f32 %v1982
          %vm1989 = vweird.f32 %v1983
          %vm1990 = vmor %vm1988, %vm1989
          %v1991 = vsel %vm1990, %v1983, %v1987
          %v1992 = vand.u32 2147483647, %v1982
          %vm1993 = vcmp.eq.f32.partialorder %v1992, 8.507059e+37
          %v1994 = vand.u32 %v1982, 2147483648
          %v1995 = vor.u32 1.1754944e-38, %v1994
          %v1996 = vsel %vm1993, %v1995, %v1991
          %v1997 = vmul.f32 %v1961, %v1996
          %v1998 = vmul.f32 %v1962, %v1996
          %v2001 = vrot.slane %v1997, 1
          %v2002 = vrot.slane %v1998, 1
          %v2005 = vsub.f32 %v1997, %v2001
          %v2006 = vsub.f32 %v1998, %v2002
          %v2007 = vand.u32 2147483647, %v2005
          %v2008 = vand.u32 2147483647, %v2006
          %v2009 = vld [vmem:[%s4] sm:$0xff]
          %v2010 = vld [vmem:[%s4 + $0x8] sm:$0xff]
          %v2011 = vld [vmem:[%s4 + $0x10] sm:$0xff]
          %v2012 = vld [vmem:[%s4 + $0x18] sm:$0xff]
          %v2013 = vld [vmem:[%s4 + $0x20] sm:$0xff]
          %v2014 = vld [vmem:[%s4 + $0x28] sm:$0xff]
          %v2015 = vld [vmem:[%s4 + $0x30] sm:$0xff]
          %v2016 = vld [vmem:[%s4 + $0x38] sm:$0xff]
          %v2017 = vld [vmem:[%s4 + $0x40] sm:$0xff]
          %v2018 = vld [vmem:[%s4 + $0x48] sm:$0xff]
          %v2019 = vld [vmem:[%s4 + $0x50] sm:$0xff]
          %v2020 = vld [vmem:[%s4 + $0x58] sm:$0xff]
          %v2021 = vld [vmem:[%s4 + $0x60] sm:$0xff]
          %v2022 = vld [vmem:[%s4 + $0x68] sm:$0xff]
          %v2023 = vld [vmem:[%s4 + $0x70] sm:$0xff]
          %v2024 = vld [vmem:[%s4 + $0x78] sm:$0xff]
          %v2025 = vld [vmem:[%s4 + $0x80] sm:$0xff]
          %v2026 = vld [vmem:[%s4 + $0x88] sm:$0xff]
          %v2027 = vld [vmem:[%s4 + $0x90] sm:$0xff]
          %v2028 = vld [vmem:[%s4 + $0x98] sm:$0xff]
          %v2029 = vld [vmem:[%s4 + $0xa0] sm:$0xff]
          %v2030 = vld [vmem:[%s4 + $0xa8] sm:$0xff]
          %v2031 = vld [vmem:[%s4 + $0xb0] sm:$0xff]
          %v2032 = vld [vmem:[%s4 + $0xb8] sm:$0xff]
          %v2033 = vld [vmem:[%s4 + $0xc0] sm:$0xff]
          %v2034 = vld [vmem:[%s4 + $0xc8] sm:$0xff]
          %v2035 = vld [vmem:[%s4 + $0xd0] sm:$0xff]
          %v2036 = vld [vmem:[%s4 + $0xd8] sm:$0xff]
          %v2037 = vld [vmem:[%s4 + $0xe0] sm:$0xff]
          %v2038 = vld [vmem:[%s4 + $0xe8] sm:$0xff]
          %v2039 = vld [vmem:[%s4 + $0xf0] sm:$0xff]
          %v2040 = vld [vmem:[%s4 + $0xf8] sm:$0xff]
          %v2041 = vld [vmem:[#allocation3] sm:$0x1]
          %2042 = vmatpush.msra.mxu0 %v2024
          %2043 = vmatpush.msra.mxu0 %v2023
          %2044 = vmatpush.msra.mxu0 %v2022
          %2045 = vmatpush.msra.mxu0 %v2021
          %2046 = vmatpush.msra.mxu0 %v2020
          %2047 = vmatpush.msra.mxu0 %v2019
          %2048 = vmatpush.msra.mxu0 %v2018
          %2049 = vmatpush.msra.mxu0 %v2017
          %2050 = vmatpush.msra.mxu0 %v2016
          %2051 = vmatpush.msra.mxu0 %v2015
          %2052 = vmatpush.msra.mxu0 %v2014
          %2053 = vmatpush.msra.mxu0 %v2013
          %2054 = vmatpush.msra.mxu0 %v2012
          %2055 = vmatpush.msra.mxu0 %v2011
          %2056 = vmatpush.msra.mxu0 %v2010
          %2057 = vmatpush.msra.mxu0 %v2009
          %2058 = vmatmul.f32.gmra.mxu0 %v2007
          %v2059 = vpop.f32.mrf.mxu0
          %v2060 = vadd.f32 %v2041, %v2059
          %2061 = vdwg.mxu0
          %2062 = vmatpush.msra.mxu0 %v2040
          %2063 = vmatpush.msra.mxu0 %v2039
          %2064 = vmatpush.msra.mxu0 %v2038
          %2065 = vmatpush.msra.mxu0 %v2037
          %2066 = vmatpush.msra.mxu0 %v2036
          %2067 = vmatpush.msra.mxu0 %v2035
          %2068 = vmatpush.msra.mxu0 %v2034
          %2069 = vmatpush.msra.mxu0 %v2033
          %2070 = vmatpush.msra.mxu0 %v2032
          %2071 = vmatpush.msra.mxu0 %v2031
          %2072 = vmatpush.msra.mxu0 %v2030
          %2073 = vmatpush.msra.mxu0 %v2029
          %2074 = vmatpush.msra.mxu0 %v2028
          %2075 = vmatpush.msra.mxu0 %v2027
          %2076 = vmatpush.msra.mxu0 %v2026
          %2077 = vmatpush.msra.mxu0 %v2025
          %2078 = vmatmul.f32.gmra.mxu0 %v2008
          %v2079 = vpop.f32.mrf.mxu0
          %v2080 = vadd.f32 %v2060, %v2079
          %2081 = vdwg.mxu0
          %v2082 = vxor.u32 %v2080, 2147483648
          %v2083 = vmul.f32 %v2082, 1.442695
          %v2084 = vpow.pop %v2083
          %v2085 = vadd.f32 %v2084, 1.0
          %v2086 = vrcp.pop %v2085
          %v2087 = vmul.f32 %v2085, %v2086
          %v2088 = vsub.f32 1.0, %v2087
          %v2089 = vmul.f32 %v2086, %v2088
          %v2090 = vadd.f32 %v2086, %v2089
          %vm2091 = vweird.f32 %v2085
          %vm2092 = vweird.f32 %v2086
          %vm2093 = vmor %vm2091, %vm2092
          %v2094 = vsel %vm2093, %v2086, %v2090
          %v2095 = vand.u32 2147483647, %v2085
          %vm2096 = vcmp.eq.f32.partialorder %v2095, 8.507059e+37
          %v2097 = vand.u32 %v2085, 2147483648
          %v2098 = vor.u32 1.1754944e-38, %v2097
          %v2099 = vsel %vm2096, %v2098, %v2094
          %v2100 = vmul.f32 1.0, %v2099
          %vm2101 = vcmask 0
          %2102 = vst.msk [vmem:[%s368] sm:$0x1] %vm2101, %v2100
        $region68: #{tpu_custom_call.1} parent=43 // pred_fallthru
          _
        %p2103 = scmp.lt.s32.totalorder %s30, 1
        %s2104 = scalar_select %p2103, %s30, 1
        %s2105 = scalar_lea.vmem %s6, %s2104
        // Predicated region
        $region69: #{tpu_custom_call.1} parent=43 // pred_check
          %p2106 = pneg %p196
        $region70: #{tpu_custom_call.1} parent=43 // pred_check_branch
          %2108 = sbr.rel (%p2106) target = $region72
        $region71: #{tpu_custom_call.1} parent=43 // pred_region
          _
        $region72: #{tpu_custom_call.1} parent=43 // pred_fallthru
          _
      $region44: #{tpu_custom_call.1} parent=5 // pred_fallthru
        _
      %p2109 = scmp.le.s32.totalorder 2, %s21
      // Predicated region
      $region73: #{tpu_custom_call.1} parent=5 // pred_check
        %p2110 = pneg %p2109
      $region74: #{tpu_custom_call.1} parent=5 // pred_check_branch
        %2112 = sbr.rel (%p2110) target = $region76
      $region75: #{tpu_custom_call.1} parent=5 // pred_region
        %s2113 = ssub.s32 %s21, 2
        // Predicated region
        $region77: #{tpu_custom_call.1} parent=75 // pred_check
          %p2114 = pneg %p202
        $region78: #{tpu_custom_call.1} parent=75 // pred_check_branch
          %2116 = sbr.rel (%p2114) target = $region80
        $region79: #{tpu_custom_call.1} parent=75 // pred_region
          %p2117 = scmp.lt.s32.totalorder %s32, 1
          %s2118 = scalar_select %p2117, %s32, 1
          %s2119 = scalar_lea.vmem %s6, %s2118
        $region80: #{tpu_custom_call.1} parent=75 // pred_fallthru
          _
      $region76: #{tpu_custom_call.1} parent=5 // pred_fallthru
        _
    $region6: #{tpu_custom_call.1} parent=1 // loop_footer
      %s25 = sadd.s32 1, %s21
    $region7: #{tpu_custom_call.1} parent=1 // loop_footer_branch
      %20 = sbr.rel target = $region3
    $region8: #{tpu_custom_call.1} parent=1 // loop_exit
      _
    %2120 = vsyncpa [#allocation5], 1
    %s2121 = scalar_lea.sflag [#allocation5], 1
    %2122 = vsyncpa %s2121, 1
    %2123 = vsyncpa [#allocation7], 1
    %s2124 = scalar_lea.sflag [#allocation7], 1
    %2125 = vsyncpa %s2124, 1
    %2126 = vsyncpa [#allocation10], 1

</llo_original>
